<compile_context>
chip_gen: v7x
topology: tpu7x:2x2x1
jax: 0.10.0
libtpu: 0.0.40
codegen_flags: <defaults>
</compile_context>

<pallas_src>
import math
import numpy as np
import jax
import jax.numpy as jnp
from jax.experimental import pallas as pl
from jax.experimental.pallas import tpu as pltpu

# ----------------------------- config -----------------------------
V = 50            # vocab size
PAD_IDX = 0
D = 32            # embedding_size
H = 64            # ffn_size
N = 2             # batch
K = 4             # max_knowledge
TC = 16           # context sequence length
TK = 16           # knowledge sequence length
N_HEADS = 2
N_POSITIONS = 32
N_SEGMENTS = 4
NEG_INF = -1e20   # parlai neginf(float32)


# ----------------------- Pallas fusion kernel -----------------------
def fusion_kernel(ctxp_ref, ctx_ref, knp_ref, kn_ref, rep_ref, seg_ref,
                  psel_ref, ckm_ref,
                  wc_ref, wk_ref, bk_ref, v_ref,
                  w1a_ref, w1b_ref, b1_ref, w2_ref, b2_ref,
                  fusion_ref, attn_ref):
    f32 = jnp.float32

    # ---- universal sentence embedding (sqrt=False) via MXU dots ----
    # pooling matrices already carry mask / max(len, 1), so no divides here.
    context_use = jnp.dot(ctxp_ref[...], ctx_ref[...],
                          preferred_element_type=f32)          # (N, D)
    know_use = jnp.dot(knp_ref[...], kn_ref[...],
                       preferred_element_type=f32)             # (N*K, D)

    # ---- MLP fusion attention: v(tanh(Wc*ctx + Wk*know + bk)) ----
    cu_wc = jnp.dot(context_use, wc_ref[...],
                    preferred_element_type=f32)                # (N, H)
    hidden = (jnp.dot(rep_ref[...], cu_wc,                     # broadcast per k
                      preferred_element_type=f32)
              + jnp.dot(know_use, wk_ref[...],
                        preferred_element_type=f32)
              + bk_ref[...])                                   # (N*K, H)
    scores = jnp.dot(jnp.tanh(hidden), v_ref[...],
                     preferred_element_type=f32)               # (N*K, 1)

    # ---- masked softmax over K (per sample), flat layout + segment dots ----
    # subtracting the global max is a per-sample constant shift -> same softmax
    scores = scores - jnp.max(scores, axis=0, keepdims=True)
    e = jnp.exp(scores) * ckm_ref[...]                         # masked -> 0
    denom = jnp.dot(seg_ref[...], e, preferred_element_type=f32)   # (N, 1)
    inv = pl.reciprocal(denom, approx=True)                    # EUP, (N, 1)
    # TODO(synk): if a sample ever has ALL knowledge masked this yields NaN
    # (reference degenerates to uniform over NEG_INF rows); not hit in eval.

    # ---- attention-weighted knowledge vector & lane-dense attn output ----
    cs = inv * jnp.dot(seg_ref[...], e * know_use,
                       preferred_element_type=f32)             # (N, D)
    attn_ref[...] = inv * jnp.dot(seg_ref[...], e * psel_ref[...],
                                  preferred_element_type=f32)  # (N, K)

    # ---- TransIntegration FFN on concat([context_use, cs], -1) ----
    # concat([a, b]) @ W1 == a @ W1[:D] + b @ W1[D:]  (w1 pre-split in wrapper)
    h = (jnp.dot(context_use, w1a_ref[...], preferred_element_type=f32)
         + jnp.dot(cs, w1b_ref[...], preferred_element_type=f32)
         + b1_ref[...])                                        # (N, H)
    h = jnp.maximum(h, 0.0)                                    # relu; dropout p=0
    fusion_ref[...] = (jnp.dot(h, w2_ref[...], preferred_element_type=f32)
                       + b2_ref[...])                          # (N, D)


def fusion_pallas(context_encoded, context_mask, know_encoded, know_mask,
                  ck_mask, p):
    f32 = jnp.float32
    NK = N * K

    # masked-mean pooling matrices with 1/max(len,1) folded in (block-diagonal)
    cm = context_mask.astype(f32)                                    # (N, TC)
    cmn = cm / jnp.maximum(cm.sum(1, keepdims=True), 1.0)
    ctx_pool = (jnp.eye(N, dtype=f32)[:, :, None] * cmn[None]
                ).reshape(N, N * TC)                                 # (N, N*TC)
    km = know_mask.astype(f32)                                       # (NK, TK)
    kmn = km / jnp.maximum(km.sum(1, keepdims=True), 1.0)
    know_pool = (jnp.eye(NK, dtype=f32)[:, :, None] * kmn[None]
                 ).reshape(NK, NK * TK)                              # (NK, NK*TK)

    rep = jnp.repeat(jnp.eye(N, dtype=f32), K, axis=0)               # (NK, N)
    seg = rep.T                                                      # (N, NK)
    psel = jnp.tile(jnp.eye(K, dtype=f32), (N, 1))                   # (NK, K)
    ckm_flat = ck_mask.astype(f32).reshape(NK, 1)                    # (NK, 1)

    ctx_flat = context_encoded.reshape(N * TC, D)                    # (N*TC, D)
    kn_flat = know_encoded.reshape(NK * TK, D)                       # (NK*TK, D)

    w1a, w1b = p['w1'][:D], p['w1'][D:]                              # (D, H) each

    inputs = (ctx_pool, ctx_flat, know_pool, kn_flat, rep, seg, psel, ckm_flat,
              p['wc'], p['wk'], p['bk'], p['v'], w1a, w1b, p['b1'],
              p['w2'], p['b2'])

    def full(x):
        r = x.ndim
        return pl.BlockSpec(x.shape, lambda i, r=r: (0,) * r)

    # Single grid step: whole problem fits comfortably in VMEM (< 100 KB),
    # so no per-sample grid loop / pipelining overhead.
    grid_spec = pltpu.PrefetchScalarGridSpec(
        num_scalar_prefetch=0,
        grid=(1,),
        in_specs=[full(x) for x in inputs],
        out_specs=[
            pl.BlockSpec((N, D), lambda i: (0, 0)),   # fusion_enc (lane-dense)
            pl.BlockSpec((N, K), lambda i: (0, 0)),   # ck_attn   (lane-dense)
        ],
    )
    fusion_enc, ck_attn = pl.pallas_call(
        fusion_kernel,
        out_shape=(jax.ShapeDtypeStruct((N, D), f32),
                   jax.ShapeDtypeStruct((N, K), f32)),
        grid_spec=grid_spec,
        compiler_params=pltpu.CompilerParams(
            dimension_semantics=("arbitrary",)),
    )(*inputs)
    return fusion_enc[:, None, :], ck_attn


# ------------------ plain-JAX glue: transformer encoder ------------------
# TODO(synk): ParlAI's TransformerEncoder internals (variant / LN placement /
# n_layers / position scaling) are external to this module; approximated here
# by a deterministic single post-LN self-attention + FFN layer in plain JAX.
def _ln(x, g, b, eps=1e-5):
    m = x.mean(-1, keepdims=True)
    v = ((x - m) ** 2).mean(-1, keepdims=True)
    return (x - m) / jnp.sqrt(v + eps) * g + b


def _mha(x, mask, wq, wk, wv, wo):
    B, T, _ = x.shape
    hd = D // N_HEADS

    def split(y):
        return y.reshape(B, T, N_HEADS, hd).transpose(0, 2, 1, 3)

    q, k, v = split(x @ wq), split(x @ wk), split(x @ wv)
    scores = jnp.einsum('bhtd,bhsd->bhts', q, k) / math.sqrt(hd)
    scores = jnp.where(mask[:, None, None, :], scores, NEG_INF)
    a = jax.nn.softmax(scores, axis=-1)
    o = jnp.einsum('bhts,bhsd->bhtd', a, v)
    return o.transpose(0, 2, 1, 3).reshape(B, T, D) @ wo


def transformer_encoder(ep, emb_table, tokens, segments=None):
    mask = tokens != PAD_IDX
    T = tokens.shape[1]
    x = emb_table[tokens] * math.sqrt(D)
    x = x + ep['pos'][:T][None, :, :]
    if segments is not None:
        x = x + ep['seg'][segments]
    x = x * mask[..., None].astype(x.dtype)
    a = _mha(x, mask, ep['wq'], ep['wk'], ep['wv'], ep['wo'])
    x = _ln(x + a, ep['ln1_g'], ep['ln1_b'])
    f = jax.nn.relu(x @ ep['fw1'] + ep['fb1']) @ ep['fw2'] + ep['fb2']
    x = _ln(x + f, ep['ln2_g'], ep['ln2_b'])
    x = x * mask[..., None].astype(x.dtype)
    return x, mask


# ----------------------- full TransIKGEncoder forward -----------------------
def trans_ikg_encoder_forward(params, src_tokens, know_tokens, ck_mask,
                              text_segments):
    context_encoded, context_mask = transformer_encoder(
        params['ctx_enc'], params['emb'], src_tokens, text_segments)
    Nn, Kk, Tk = know_tokens.shape
    know_flat = know_tokens.reshape(-1, Tk)
    know_encoded, know_mask = transformer_encoder(
        params['know_enc'], params['emb'], know_flat)

    fusion_enc, ck_attn = fusion_pallas(
        context_encoded, context_mask, know_encoded, know_mask, ck_mask,
        params['fusion'])

    know_encoded_r = know_encoded.reshape(Nn, -1, D)
    know_mask_r = know_mask.reshape(Nn, -1)
    know_tokens_r = know_tokens.reshape(Nn, -1)
    return (context_encoded, context_mask, src_tokens, know_encoded_r,
            know_mask_r, know_tokens_r, fusion_enc, text_segments, ck_attn)


# ----------------------- pure-JAX reference of the fusion -----------------------
def fusion_reference(context_encoded, context_mask, know_encoded, know_mask,
                     ck_mask, p):
    cm = context_mask.astype(jnp.float32)
    ctx_sum = jnp.einsum('ntd,nt->nd', context_encoded, cm)
    context_use = ctx_sum / jnp.maximum(cm.sum(1, keepdims=True), 1.0)
    km = know_mask.astype(jnp.float32)
    k_sum = jnp.einsum('ntd,nt->nd', know_encoded, km)
    know_use = (k_sum / jnp.maximum(km.sum(1, keepdims=True), 1.0)
                ).reshape(N, K, D)
    hidden = context_use[:, None, :] @ p['wc'] + know_use @ p['wk'] + p['bk']
    scores = (jnp.tanh(hidden) @ p['v'])[..., 0]
    scores = jnp.where(ck_mask, scores, NEG_INF)
    attn = jax.nn.softmax(scores, axis=-1)
    cs = jnp.einsum('nk,nkd->nd', attn, know_use)
    x = jnp.concatenate([context_use, cs], axis=-1)[:, None, :]
    h = jax.nn.relu(x @ p['w1'] + p['b1'])
    return h @ p['w2'] + p['b2'], attn


# ----------------------------- deterministic params -----------------------------
def make_params(key):
    ks = jax.random.split(key, 16)

    def xavier(k, shape):
        lim = math.sqrt(6.0 / (shape[-2] + shape[-1]))
        return jax.random.uniform(k, shape, jnp.float32, -lim, lim)

    emb = jax.random.normal(ks[0], (V, D), jnp.float32) * 0.02
    emb = emb.at[PAD_IDX].set(0.0)

    def enc_params(kk):
        kk = jax.random.split(kk, 8)
        return dict(
            pos=jax.random.normal(kk[0], (N_POSITIONS, D), jnp.float32) * 0.02,
            seg=jax.random.normal(kk[1], (N_SEGMENTS, D), jnp.float32) * 0.02,
            wq=xavier(kk[2], (D, D)), wk=xavier(kk[3], (D, D)),
            wv=xavier(kk[4], (D, D)), wo=xavier(kk[5], (D, D)),
            fw1=xavier(kk[6], (D, H)), fb1=jnp.zeros((H,), jnp.float32),
            fw2=xavier(kk[7], (H, D)), fb2=jnp.zeros((D,), jnp.float32),
            ln1_g=jnp.ones((D,), jnp.float32), ln1_b=jnp.zeros((D,), jnp.float32),
            ln2_g=jnp.ones((D,), jnp.float32), ln2_b=jnp.zeros((D,), jnp.float32),
        )

    fusion = dict(
        wc=xavier(ks[3], (D, H)),                 # linear_context (no bias)
        wk=xavier(ks[4], (D, H)),                 # linear_know
        bk=jax.random.uniform(ks[5], (1, H), jnp.float32, -0.1, 0.1),
        v=xavier(ks[6], (H, 1)),                  # v (no bias)
        w1=xavier(ks[7], (2 * D, H)),             # fusion_ffn.lin1
        b1=jax.random.uniform(ks[8], (1, H), jnp.float32, -0.1, 0.1),
        w2=xavier(ks[9], (H, D)),                 # fusion_ffn.lin2
        b2=jax.random.uniform(ks[10], (1, D), jnp.float32, -0.1, 0.1),
    )
    return dict(emb=emb, ctx_enc=enc_params(ks[1]),
                know_enc=enc_params(ks[2]), fusion=fusion)


if __name__ == "__main__":
    key = jax.random.PRNGKey(0)
    pk, k1, k2 = jax.random.split(key, 3)
    params = make_params(pk)

    src_tokens = jax.random.randint(k1, (N, TC), 1, V)
    src_tokens = src_tokens.at[:, TC - 3:].set(PAD_IDX)           # tail padding
    know_tokens = jax.random.randint(k2, (N, K, TK), 1, V)
    know_tokens = know_tokens.at[:, :, TK - 2:].set(PAD_IDX)
    ck_mask = jnp.ones((N, K), dtype=bool).at[1, K - 1].set(False)
    text_segments = jnp.zeros((N, TC), dtype=jnp.int32).at[:, TC // 2:].set(1)

    outs = trans_ikg_encoder_forward(params, src_tokens, know_tokens, ck_mask,
                                     text_segments)
    outs = jax.block_until_ready(outs)

    # correctness check of the Pallas fusion against a pure-JAX reference
    ctx_enc, ctx_mask = transformer_encoder(params['ctx_enc'], params['emb'],
                                            src_tokens, text_segments)
    kn_enc, kn_mask = transformer_encoder(params['know_enc'], params['emb'],
                                          know_tokens.reshape(-1, TK))
    ref_fe, ref_attn = fusion_reference(ctx_enc, ctx_mask, kn_enc, kn_mask,
                                        ck_mask, params['fusion'])
    np.testing.assert_allclose(np.asarray(outs[6]), np.asarray(ref_fe),
                               rtol=1e-3, atol=1e-3)
    np.testing.assert_allclose(np.asarray(outs[8]), np.asarray(ref_attn),
                               rtol=1e-3, atol=1e-3)
    print("KERNEL_OK")
</pallas_src>

<mosaic_0001>
module attributes {stable_mosaic.version = 11 : i64} {
  func.func @fusion_kernel(%arg0: i32, %arg1: memref<2x32xf32, #tpu.memory_space<vmem>>, %arg2: memref<32x32xf32, #tpu.memory_space<vmem>>, %arg3: memref<8x128xf32, #tpu.memory_space<vmem>>, %arg4: memref<128x32xf32, #tpu.memory_space<vmem>>, %arg5: memref<8x2xf32, #tpu.memory_space<vmem>>, %arg6: memref<2x8xf32, #tpu.memory_space<vmem>>, %arg7: memref<8x4xf32, #tpu.memory_space<vmem>>, %arg8: memref<8x1xf32, #tpu.memory_space<vmem>>, %arg9: memref<32x64xf32, #tpu.memory_space<vmem>>, %arg10: memref<32x64xf32, #tpu.memory_space<vmem>>, %arg11: memref<1x64xf32, #tpu.memory_space<vmem>>, %arg12: memref<64x1xf32, #tpu.memory_space<vmem>>, %arg13: memref<32x64xf32, #tpu.memory_space<vmem>>, %arg14: memref<32x64xf32, #tpu.memory_space<vmem>>, %arg15: memref<1x64xf32, #tpu.memory_space<vmem>>, %arg16: memref<64x32xf32, #tpu.memory_space<vmem>>, %arg17: memref<1x32xf32, #tpu.memory_space<vmem>>, %arg18: memref<2x32xf32, #tpu.memory_space<vmem>>, %arg19: memref<2x4xf32, #tpu.memory_space<vmem>>) attributes {dimension_semantics = [#tpu.dimension_semantics<arbitrary>], iteration_bounds = array<i64: 1>, scalar_prefetch = 0 : i64, scratch_operands = 0 : i64, tpu.core_type = #tpu.core_type<tc>, window_params = [{pipeline_mode = #tpu.pipeline_mode<synchronous>, transform_indices = @transform_0, window_bounds = array<i64: 2, 32>}, {pipeline_mode = #tpu.pipeline_mode<synchronous>, transform_indices = @transform_1, window_bounds = array<i64: 32, 32>}, {pipeline_mode = #tpu.pipeline_mode<synchronous>, transform_indices = @transform_2, window_bounds = array<i64: 8, 128>}, {pipeline_mode = #tpu.pipeline_mode<synchronous>, transform_indices = @transform_3, window_bounds = array<i64: 128, 32>}, {pipeline_mode = #tpu.pipeline_mode<synchronous>, transform_indices = @transform_4, window_bounds = array<i64: 8, 2>}, {pipeline_mode = #tpu.pipeline_mode<synchronous>, transform_indices = @transform_5, window_bounds = array<i64: 2, 8>}, {pipeline_mode = #tpu.pipeline_mode<synchronous>, transform_indices = @transform_6, window_bounds = array<i64: 8, 4>}, {pipeline_mode = #tpu.pipeline_mode<synchronous>, transform_indices = @transform_7, window_bounds = array<i64: 8, 1>}, {pipeline_mode = #tpu.pipeline_mode<synchronous>, transform_indices = @transform_8, window_bounds = array<i64: 32, 64>}, {pipeline_mode = #tpu.pipeline_mode<synchronous>, transform_indices = @transform_9, window_bounds = array<i64: 32, 64>}, {pipeline_mode = #tpu.pipeline_mode<synchronous>, transform_indices = @transform_10, window_bounds = array<i64: 1, 64>}, {pipeline_mode = #tpu.pipeline_mode<synchronous>, transform_indices = @transform_11, window_bounds = array<i64: 64, 1>}, {pipeline_mode = #tpu.pipeline_mode<synchronous>, transform_indices = @transform_12, window_bounds = array<i64: 32, 64>}, {pipeline_mode = #tpu.pipeline_mode<synchronous>, transform_indices = @transform_13, window_bounds = array<i64: 32, 64>}, {pipeline_mode = #tpu.pipeline_mode<synchronous>, transform_indices = @transform_14, window_bounds = array<i64: 1, 64>}, {pipeline_mode = #tpu.pipeline_mode<synchronous>, transform_indices = @transform_15, window_bounds = array<i64: 64, 32>}, {pipeline_mode = #tpu.pipeline_mode<synchronous>, transform_indices = @transform_16, window_bounds = array<i64: 1, 32>}, {pipeline_mode = #tpu.pipeline_mode<synchronous>, transform_indices = @transform_17, window_bounds = array<i64: 2, 32>}, {pipeline_mode = #tpu.pipeline_mode<synchronous>, transform_indices = @transform_18, window_bounds = array<i64: 2, 4>}]} {
    %c0 = arith.constant 0 : index
    %c0_0 = arith.constant 0 : index
    %0 = vector.load %arg1[%c0, %c0_0] : memref<2x32xf32, #tpu.memory_space<vmem>>, vector<2x32xf32>
    %c0_1 = arith.constant 0 : index
    %c0_2 = arith.constant 0 : index
    %1 = vector.load %arg2[%c0_1, %c0_2] : memref<32x32xf32, #tpu.memory_space<vmem>>, vector<32x32xf32>
    %cst = arith.constant dense<0.000000e+00> : vector<2x32xf32>
    %2 = tpu.matmul %0, %1, %cst {dimension_numbers = #tpu.dot_dimension_numbers<[1], [0], [0], [1], [0, 0, 1, 1], [], []>} : vector<2x32xf32>, vector<32x32xf32>, vector<2x32xf32> -> vector<2x32xf32>
    %c0_3 = arith.constant 0 : index
    %c0_4 = arith.constant 0 : index
    %3 = vector.load %arg3[%c0_3, %c0_4] : memref<8x128xf32, #tpu.memory_space<vmem>>, vector<8x128xf32>
    %c0_5 = arith.constant 0 : index
    %c0_6 = arith.constant 0 : index
    %4 = vector.load %arg4[%c0_5, %c0_6] : memref<128x32xf32, #tpu.memory_space<vmem>>, vector<128x32xf32>
    %cst_7 = arith.constant dense<0.000000e+00> : vector<8x32xf32>
    %5 = tpu.matmul %3, %4, %cst_7 {dimension_numbers = #tpu.dot_dimension_numbers<[1], [0], [0], [1], [0, 0, 1, 1], [], []>} : vector<8x128xf32>, vector<128x32xf32>, vector<8x32xf32> -> vector<8x32xf32>
    %c0_8 = arith.constant 0 : index
    %c0_9 = arith.constant 0 : index
    %6 = vector.load %arg9[%c0_8, %c0_9] : memref<32x64xf32, #tpu.memory_space<vmem>>, vector<32x64xf32>
    %cst_10 = arith.constant dense<0.000000e+00> : vector<2x64xf32>
    %7 = tpu.matmul %2, %6, %cst_10 {dimension_numbers = #tpu.dot_dimension_numbers<[1], [0], [0], [1], [0, 0, 1, 1], [], []>} : vector<2x32xf32>, vector<32x64xf32>, vector<2x64xf32> -> vector<2x64xf32>
    %c0_11 = arith.constant 0 : index
    %c0_12 = arith.constant 0 : index
    %8 = vector.load %arg5[%c0_11, %c0_12] : memref<8x2xf32, #tpu.memory_space<vmem>>, vector<8x2xf32>
    %cst_13 = arith.constant dense<0.000000e+00> : vector<8x64xf32>
    %9 = tpu.matmul %8, %7, %cst_13 {dimension_numbers = #tpu.dot_dimension_numbers<[1], [0], [0], [1], [0, 0, 1, 1], [], []>} : vector<8x2xf32>, vector<2x64xf32>, vector<8x64xf32> -> vector<8x64xf32>
    %c0_14 = arith.constant 0 : index
    %c0_15 = arith.constant 0 : index
    %10 = vector.load %arg10[%c0_14, %c0_15] : memref<32x64xf32, #tpu.memory_space<vmem>>, vector<32x64xf32>
    %cst_16 = arith.constant dense<0.000000e+00> : vector<8x64xf32>
    %11 = tpu.matmul %5, %10, %cst_16 {dimension_numbers = #tpu.dot_dimension_numbers<[1], [0], [0], [1], [0, 0, 1, 1], [], []>} : vector<8x32xf32>, vector<32x64xf32>, vector<8x64xf32> -> vector<8x64xf32>
    %12 = arith.addf %9, %11 : vector<8x64xf32>
    %c0_17 = arith.constant 0 : index
    %c0_18 = arith.constant 0 : index
    %13 = vector.load %arg11[%c0_17, %c0_18] : memref<1x64xf32, #tpu.memory_space<vmem>>, vector<1x64xf32>
    %14 = vector.broadcast %13 : vector<1x64xf32> to vector<8x64xf32>
    %15 = arith.addf %12, %14 : vector<8x64xf32>
    %16 = math.tanh %15 : vector<8x64xf32>
    %c0_19 = arith.constant 0 : index
    %c0_20 = arith.constant 0 : index
    %17 = vector.load %arg12[%c0_19, %c0_20] : memref<64x1xf32, #tpu.memory_space<vmem>>, vector<64x1xf32>
    %cst_21 = arith.constant dense<0.000000e+00> : vector<8x1xf32>
    %18 = tpu.matmul %16, %17, %cst_21 {dimension_numbers = #tpu.dot_dimension_numbers<[1], [0], [0], [1], [0, 0, 1, 1], [], []>} : vector<8x64xf32>, vector<64x1xf32>, vector<8x1xf32> -> vector<8x1xf32>
    %cst_22 = arith.constant dense<0xFF800000> : vector<1xf32>
    %19 = vector.multi_reduction <maximumf>, %18, %cst_22 [0] : vector<8x1xf32> to vector<1xf32>
    %20 = vector.shape_cast %19 : vector<1xf32> to vector<1x1xf32>
    %21 = vector.broadcast %20 : vector<1x1xf32> to vector<8x1xf32>
    %22 = arith.subf %18, %21 : vector<8x1xf32>
    %23 = math.exp %22 : vector<8x1xf32>
    %c0_23 = arith.constant 0 : index
    %c0_24 = arith.constant 0 : index
    %24 = vector.load %arg8[%c0_23, %c0_24] : memref<8x1xf32, #tpu.memory_space<vmem>>, vector<8x1xf32>
    %25 = arith.mulf %23, %24 : vector<8x1xf32>
    %c0_25 = arith.constant 0 : index
    %c0_26 = arith.constant 0 : index
    %26 = vector.load %arg6[%c0_25, %c0_26] : memref<2x8xf32, #tpu.memory_space<vmem>>, vector<2x8xf32>
    %cst_27 = arith.constant dense<0.000000e+00> : vector<2x1xf32>
    %27 = tpu.matmul %26, %25, %cst_27 {dimension_numbers = #tpu.dot_dimension_numbers<[1], [0], [0], [1], [0, 0, 1, 1], [], []>} : vector<2x8xf32>, vector<8x1xf32>, vector<2x1xf32> -> vector<2x1xf32>
    %28 = tpu.reciprocal %27 {approx = true} : vector<2x1xf32> -> vector<2x1xf32>
    %c0_28 = arith.constant 0 : index
    %c0_29 = arith.constant 0 : index
    %29 = vector.load %arg6[%c0_28, %c0_29] : memref<2x8xf32, #tpu.memory_space<vmem>>, vector<2x8xf32>
    %30 = vector.broadcast %25 : vector<8x1xf32> to vector<8x32xf32>
    %31 = arith.mulf %30, %5 : vector<8x32xf32>
    %cst_30 = arith.constant dense<0.000000e+00> : vector<2x32xf32>
    %32 = tpu.matmul %29, %31, %cst_30 {dimension_numbers = #tpu.dot_dimension_numbers<[1], [0], [0], [1], [0, 0, 1, 1], [], []>} : vector<2x8xf32>, vector<8x32xf32>, vector<2x32xf32> -> vector<2x32xf32>
    %33 = vector.broadcast %28 : vector<2x1xf32> to vector<2x32xf32>
    %34 = arith.mulf %33, %32 : vector<2x32xf32>
    %c0_31 = arith.constant 0 : index
    %c0_32 = arith.constant 0 : index
    %35 = vector.load %arg6[%c0_31, %c0_32] : memref<2x8xf32, #tpu.memory_space<vmem>>, vector<2x8xf32>
    %c0_33 = arith.constant 0 : index
    %c0_34 = arith.constant 0 : index
    %36 = vector.load %arg7[%c0_33, %c0_34] : memref<8x4xf32, #tpu.memory_space<vmem>>, vector<8x4xf32>
    %37 = vector.broadcast %25 : vector<8x1xf32> to vector<8x4xf32>
    %38 = arith.mulf %37, %36 : vector<8x4xf32>
    %cst_35 = arith.constant dense<0.000000e+00> : vector<2x4xf32>
    %39 = tpu.matmul %35, %38, %cst_35 {dimension_numbers = #tpu.dot_dimension_numbers<[1], [0], [0], [1], [0, 0, 1, 1], [], []>} : vector<2x8xf32>, vector<8x4xf32>, vector<2x4xf32> -> vector<2x4xf32>
    %40 = vector.broadcast %28 : vector<2x1xf32> to vector<2x4xf32>
    %41 = arith.mulf %40, %39 : vector<2x4xf32>
    %c0_36 = arith.constant 0 : index
    %c0_37 = arith.constant 0 : index
    %42 = vector.load %arg19[%c0_36, %c0_37] : memref<2x4xf32, #tpu.memory_space<vmem>>, vector<2x4xf32>
    tpu.vector_store %arg19[%c0_36, %c0_37], %41 {strides = array<i32>} : memref<2x4xf32, #tpu.memory_space<vmem>>, vector<2x4xf32>,
    %c0_38 = arith.constant 0 : index
    %c0_39 = arith.constant 0 : index
    %43 = vector.load %arg13[%c0_38, %c0_39] : memref<32x64xf32, #tpu.memory_space<vmem>>, vector<32x64xf32>
    %cst_40 = arith.constant dense<0.000000e+00> : vector<2x64xf32>
    %44 = tpu.matmul %2, %43, %cst_40 {dimension_numbers = #tpu.dot_dimension_numbers<[1], [0], [0], [1], [0, 0, 1, 1], [], []>} : vector<2x32xf32>, vector<32x64xf32>, vector<2x64xf32> -> vector<2x64xf32>
    %c0_41 = arith.constant 0 : index
    %c0_42 = arith.constant 0 : index
    %45 = vector.load %arg14[%c0_41, %c0_42] : memref<32x64xf32, #tpu.memory_space<vmem>>, vector<32x64xf32>
    %cst_43 = arith.constant dense<0.000000e+00> : vector<2x64xf32>
    %46 = tpu.matmul %34, %45, %cst_43 {dimension_numbers = #tpu.dot_dimension_numbers<[1], [0], [0], [1], [0, 0, 1, 1], [], []>} : vector<2x32xf32>, vector<32x64xf32>, vector<2x64xf32> -> vector<2x64xf32>
    %47 = arith.addf %44, %46 : vector<2x64xf32>
    %c0_44 = arith.constant 0 : index
    %c0_45 = arith.constant 0 : index
    %48 = vector.load %arg15[%c0_44, %c0_45] : memref<1x64xf32, #tpu.memory_space<vmem>>, vector<1x64xf32>
    %49 = vector.broadcast %48 : vector<1x64xf32> to vector<2x64xf32>
    %50 = arith.addf %47, %49 : vector<2x64xf32>
    %cst_46 = arith.constant 0.000000e+00 : f32
    %51 = vector.broadcast %cst_46 : f32 to vector<2x64xf32>
    %52 = arith.maximumf %50, %51 : vector<2x64xf32>
    %c0_47 = arith.constant 0 : index
    %c0_48 = arith.constant 0 : index
    %53 = vector.load %arg16[%c0_47, %c0_48] : memref<64x32xf32, #tpu.memory_space<vmem>>, vector<64x32xf32>
    %cst_49 = arith.constant dense<0.000000e+00> : vector<2x32xf32>
    %54 = tpu.matmul %52, %53, %cst_49 {dimension_numbers = #tpu.dot_dimension_numbers<[1], [0], [0], [1], [0, 0, 1, 1], [], []>} : vector<2x64xf32>, vector<64x32xf32>, vector<2x32xf32> -> vector<2x32xf32>
    %c0_50 = arith.constant 0 : index
    %c0_51 = arith.constant 0 : index
    %55 = vector.load %arg17[%c0_50, %c0_51] : memref<1x32xf32, #tpu.memory_space<vmem>>, vector<1x32xf32>
    %56 = vector.broadcast %55 : vector<1x32xf32> to vector<2x32xf32>
    %57 = arith.addf %54, %56 : vector<2x32xf32>
    %c0_52 = arith.constant 0 : index
    %c0_53 = arith.constant 0 : index
    %58 = vector.load %arg18[%c0_52, %c0_53] : memref<2x32xf32, #tpu.memory_space<vmem>>, vector<2x32xf32>
    tpu.vector_store %arg18[%c0_52, %c0_53], %57 {strides = array<i32>} : memref<2x32xf32, #tpu.memory_space<vmem>>, vector<2x32xf32>,
    return
  }
  func.func @transform_0(%arg0: i32) -> (i32, i32) {
    %c0_i32 = arith.constant 0 : i32
    %c0_i32_0 = arith.constant 0 : i32
    %c0_i32_1 = arith.constant 0 : i32
    return %c0_i32, %c0_i32_0 : i32, i32
  }
  func.func @transform_1(%arg0: i32) -> (i32, i32) {
    %c0_i32 = arith.constant 0 : i32
    %c0_i32_0 = arith.constant 0 : i32
    %c0_i32_1 = arith.constant 0 : i32
    return %c0_i32, %c0_i32_0 : i32, i32
  }
  func.func @transform_2(%arg0: i32) -> (i32, i32) {
    %c0_i32 = arith.constant 0 : i32
    %c0_i32_0 = arith.constant 0 : i32
    %c0_i32_1 = arith.constant 0 : i32
    return %c0_i32, %c0_i32_0 : i32, i32
  }
  func.func @transform_3(%arg0: i32) -> (i32, i32) {
    %c0_i32 = arith.constant 0 : i32
    %c0_i32_0 = arith.constant 0 : i32
    %c0_i32_1 = arith.constant 0 : i32
    return %c0_i32, %c0_i32_0 : i32, i32
  }
  func.func @transform_4(%arg0: i32) -> (i32, i32) {
    %c0_i32 = arith.constant 0 : i32
    %c0_i32_0 = arith.constant 0 : i32
    %c0_i32_1 = arith.constant 0 : i32
    return %c0_i32, %c0_i32_0 : i32, i32
  }
  func.func @transform_5(%arg0: i32) -> (i32, i32) {
    %c0_i32 = arith.constant 0 : i32
    %c0_i32_0 = arith.constant 0 : i32
    %c0_i32_1 = arith.constant 0 : i32
    return %c0_i32, %c0_i32_0 : i32, i32
  }
  func.func @transform_6(%arg0: i32) -> (i32, i32) {
    %c0_i32 = arith.constant 0 : i32
    %c0_i32_0 = arith.constant 0 : i32
    %c0_i32_1 = arith.constant 0 : i32
    return %c0_i32, %c0_i32_0 : i32, i32
  }
  func.func @transform_7(%arg0: i32) -> (i32, i32) {
    %c0_i32 = arith.constant 0 : i32
    %c0_i32_0 = arith.constant 0 : i32
    %c0_i32_1 = arith.constant 0 : i32
    return %c0_i32, %c0_i32_0 : i32, i32
  }
  func.func @transform_8(%arg0: i32) -> (i32, i32) {
    %c0_i32 = arith.constant 0 : i32
    %c0_i32_0 = arith.constant 0 : i32
    %c0_i32_1 = arith.constant 0 : i32
    return %c0_i32, %c0_i32_0 : i32, i32
  }
  func.func @transform_9(%arg0: i32) -> (i32, i32) {
    %c0_i32 = arith.constant 0 : i32
    %c0_i32_0 = arith.constant 0 : i32
    %c0_i32_1 = arith.constant 0 : i32
    return %c0_i32, %c0_i32_0 : i32, i32
  }
  func.func @transform_10(%arg0: i32) -> (i32, i32) {
    %c0_i32 = arith.constant 0 : i32
    %c0_i32_0 = arith.constant 0 : i32
    %c0_i32_1 = arith.constant 0 : i32
    return %c0_i32, %c0_i32_0 : i32, i32
  }
  func.func @transform_11(%arg0: i32) -> (i32, i32) {
    %c0_i32 = arith.constant 0 : i32
    %c0_i32_0 = arith.constant 0 : i32
    %c0_i32_1 = arith.constant 0 : i32
    return %c0_i32, %c0_i32_0 : i32, i32
  }
  func.func @transform_12(%arg0: i32) -> (i32, i32) {
    %c0_i32 = arith.constant 0 : i32
    %c0_i32_0 = arith.constant 0 : i32
    %c0_i32_1 = arith.constant 0 : i32
    return %c0_i32, %c0_i32_0 : i32, i32
  }
  func.func @transform_13(%arg0: i32) -> (i32, i32) {
    %c0_i32 = arith.constant 0 : i32
    %c0_i32_0 = arith.constant 0 : i32
    %c0_i32_1 = arith.constant 0 : i32
    return %c0_i32, %c0_i32_0 : i32, i32
  }
  func.func @transform_14(%arg0: i32) -> (i32, i32) {
    %c0_i32 = arith.constant 0 : i32
    %c0_i32_0 = arith.constant 0 : i32
    %c0_i32_1 = arith.constant 0 : i32
    return %c0_i32, %c0_i32_0 : i32, i32
  }
  func.func @transform_15(%arg0: i32) -> (i32, i32) {
    %c0_i32 = arith.constant 0 : i32
    %c0_i32_0 = arith.constant 0 : i32
    %c0_i32_1 = arith.constant 0 : i32
    return %c0_i32, %c0_i32_0 : i32, i32
  }
  func.func @transform_16(%arg0: i32) -> (i32, i32) {
    %c0_i32 = arith.constant 0 : i32
    %c0_i32_0 = arith.constant 0 : i32
    %c0_i32_1 = arith.constant 0 : i32
    return %c0_i32, %c0_i32_0 : i32, i32
  }
  func.func @transform_17(%arg0: i32) -> (i32, i32) {
    %c0_i32 = arith.constant 0 : i32
    %c0_i32_0 = arith.constant 0 : i32
    %c0_i32_1 = arith.constant 0 : i32
    return %c0_i32, %c0_i32_0 : i32, i32
  }
  func.func @transform_18(%arg0: i32) -> (i32, i32) {
    %c0_i32 = arith.constant 0 : i32
    %c0_i32_0 = arith.constant 0 : i32
    %c0_i32_1 = arith.constant 0 : i32
    return %c0_i32, %c0_i32_0 : i32, i32
  }
}

</mosaic_0001>

<llo_original>
// kernel: tpu_custom_call.1
$region0: #{tpu_custom_call.1}
  #allocation0 [shape = 'u32[]', space=smem, size = 0x4, offset = 0x4, fixed_abs, tag = 'smem constant byte address 0x4 - core index']
  #allocation1 [shape = 'u32[144,128]{1,0:T(1,128)}', space=vmem, size = 0x12000, scoped, tag = 'internal scratch']
  %s0 = inlined_call_operand.vmem [shape: f32[2,32], index: 0, kind: input, shape index: {}]
  %s1 = inlined_call_operand.vmem [shape: f32[32,32], index: 1, kind: input, shape index: {}]
  %s2 = inlined_call_operand.vmem [shape: f32[8,128], index: 2, kind: input, shape index: {}]
  %s3 = inlined_call_operand.vmem [shape: f32[128,32], index: 3, kind: input, shape index: {}]
  %s4 = inlined_call_operand.vmem [shape: f32[8,2], index: 4, kind: input, shape index: {}]
  %s5 = inlined_call_operand.vmem [shape: f32[2,8], index: 5, kind: input, shape index: {}]
  %s6 = inlined_call_operand.vmem [shape: f32[8,4], index: 6, kind: input, shape index: {}]
  %s7 = inlined_call_operand.vmem [shape: f32[8,1], index: 7, kind: input, shape index: {}]
  %s8 = inlined_call_operand.vmem [shape: f32[32,64], index: 8, kind: input, shape index: {}]
  %s9 = inlined_call_operand.vmem [shape: f32[32,64], index: 9, kind: input, shape index: {}]
  %s10 = inlined_call_operand.vmem [shape: f32[1,64], index: 10, kind: input, shape index: {}]
  %s11 = inlined_call_operand.vmem [shape: f32[64,1], index: 11, kind: input, shape index: {}]
  %s12 = inlined_call_operand.vmem [shape: f32[32,64], index: 12, kind: input, shape index: {}]
  %s13 = inlined_call_operand.vmem [shape: f32[32,64], index: 13, kind: input, shape index: {}]
  %s14 = inlined_call_operand.vmem [shape: f32[1,64], index: 14, kind: input, shape index: {}]
  %s15 = inlined_call_operand.vmem [shape: f32[64,32], index: 15, kind: input, shape index: {}]
  %s16 = inlined_call_operand.vmem [shape: f32[1,32], index: 16, kind: input, shape index: {}]
  %s17 = inlined_call_operand.hbm [shape: f32[2,32], index: 17, kind: output, shape index: {0}]
  %s18 = inlined_call_operand.hbm [shape: f32[2,4], index: 18, kind: output, shape index: {1}]
  %19 = xla_tuple %s17, %s18
  %s20 = sld [smem:[#allocation0]]
  $region86: #{tpu_custom_call.1} parent=0
    _
  %s22 = ssub.s32 1, %s20
  %s23 = scalar_select 0, %s22, %s20
  $region1: #{tpu_custom_call.1} parent=0
    #allocation2 [shape = 'u8[1024]{0}', space=vmem, size = 0x400, scoped, tag = 'output window, operand 0, single buffered']
    #allocation3 [shape = 's32[1]{0}', space=sflag, size = 0x4, scoped, tag = 'scoped memory for tpu_custom_call.1']
    #allocation4 [shape = 'u8[1024]{0}', space=vmem, size = 0x400, scoped, tag = 'output window, operand 1, single buffered']
    #allocation5 [shape = 's32[1]{0}', space=sflag, size = 0x4, scoped, tag = 'scoped memory for tpu_custom_call.1']
    %24 = vsyncpa [#allocation3], 0
    %25 = vsyncpa [#allocation5], 0
    // Predicated region
    $region2: #{tpu_custom_call.1} parent=1 // pred_check
      _
    $region3: #{tpu_custom_call.1} parent=1 // pred_check_branch
      %27 = sbr.rel (0) target = $region5
    $region4: #{tpu_custom_call.1} parent=1 // pred_region
      _
    $region5: #{tpu_custom_call.1} parent=1 // pred_fallthru
      _
    // Predicated region
    $region6: #{tpu_custom_call.1} parent=1 // pred_check
      _
    $region7: #{tpu_custom_call.1} parent=1 // pred_check_branch
      %29 = sbr.rel (0) target = $region9
    $region8: #{tpu_custom_call.1} parent=1 // pred_region
      _
    $region9: #{tpu_custom_call.1} parent=1 // pred_fallthru
      _
    // Predicated region
    $region10: #{tpu_custom_call.1} parent=1 // pred_check
      _
    $region11: #{tpu_custom_call.1} parent=1 // pred_check_branch
      %31 = sbr.rel (0) target = $region13
    $region12: #{tpu_custom_call.1} parent=1 // pred_region
      _
    $region13: #{tpu_custom_call.1} parent=1 // pred_fallthru
      _
    // Predicated region
    $region14: #{tpu_custom_call.1} parent=1 // pred_check
      _
    $region15: #{tpu_custom_call.1} parent=1 // pred_check_branch
      %33 = sbr.rel (0) target = $region17
    $region16: #{tpu_custom_call.1} parent=1 // pred_region
      _
    $region17: #{tpu_custom_call.1} parent=1 // pred_fallthru
      _
    // Predicated region
    $region18: #{tpu_custom_call.1} parent=1 // pred_check
      _
    $region19: #{tpu_custom_call.1} parent=1 // pred_check_branch
      %35 = sbr.rel (0) target = $region21
    $region20: #{tpu_custom_call.1} parent=1 // pred_region
      _
    $region21: #{tpu_custom_call.1} parent=1 // pred_fallthru
      _
    // Predicated region
    $region22: #{tpu_custom_call.1} parent=1 // pred_check
      _
    $region23: #{tpu_custom_call.1} parent=1 // pred_check_branch
      %37 = sbr.rel (0) target = $region25
    $region24: #{tpu_custom_call.1} parent=1 // pred_region
      _
    $region25: #{tpu_custom_call.1} parent=1 // pred_fallthru
      _
    // Predicated region
    $region26: #{tpu_custom_call.1} parent=1 // pred_check
      _
    $region27: #{tpu_custom_call.1} parent=1 // pred_check_branch
      %39 = sbr.rel (0) target = $region29
    $region28: #{tpu_custom_call.1} parent=1 // pred_region
      _
    $region29: #{tpu_custom_call.1} parent=1 // pred_fallthru
      _
    // Predicated region
    $region30: #{tpu_custom_call.1} parent=1 // pred_check
      _
    $region31: #{tpu_custom_call.1} parent=1 // pred_check_branch
      %41 = sbr.rel (0) target = $region33
    $region32: #{tpu_custom_call.1} parent=1 // pred_region
      _
    $region33: #{tpu_custom_call.1} parent=1 // pred_fallthru
      _
    // Predicated region
    $region34: #{tpu_custom_call.1} parent=1 // pred_check
      _
    $region35: #{tpu_custom_call.1} parent=1 // pred_check_branch
      %43 = sbr.rel (0) target = $region37
    $region36: #{tpu_custom_call.1} parent=1 // pred_region
      _
    $region37: #{tpu_custom_call.1} parent=1 // pred_fallthru
      _
    // Predicated region
    $region38: #{tpu_custom_call.1} parent=1 // pred_check
      _
    $region39: #{tpu_custom_call.1} parent=1 // pred_check_branch
      %45 = sbr.rel (0) target = $region41
    $region40: #{tpu_custom_call.1} parent=1 // pred_region
      _
    $region41: #{tpu_custom_call.1} parent=1 // pred_fallthru
      _
    // Predicated region
    $region42: #{tpu_custom_call.1} parent=1 // pred_check
      _
    $region43: #{tpu_custom_call.1} parent=1 // pred_check_branch
      %47 = sbr.rel (0) target = $region45
    $region44: #{tpu_custom_call.1} parent=1 // pred_region
      _
    $region45: #{tpu_custom_call.1} parent=1 // pred_fallthru
      _
    // Predicated region
    $region46: #{tpu_custom_call.1} parent=1 // pred_check
      _
    $region47: #{tpu_custom_call.1} parent=1 // pred_check_branch
      %49 = sbr.rel (0) target = $region49
    $region48: #{tpu_custom_call.1} parent=1 // pred_region
      _
    $region49: #{tpu_custom_call.1} parent=1 // pred_fallthru
      _
    // Predicated region
    $region50: #{tpu_custom_call.1} parent=1 // pred_check
      _
    $region51: #{tpu_custom_call.1} parent=1 // pred_check_branch
      %51 = sbr.rel (0) target = $region53
    $region52: #{tpu_custom_call.1} parent=1 // pred_region
      _
    $region53: #{tpu_custom_call.1} parent=1 // pred_fallthru
      _
    // Predicated region
    $region54: #{tpu_custom_call.1} parent=1 // pred_check
      _
    $region55: #{tpu_custom_call.1} parent=1 // pred_check_branch
      %53 = sbr.rel (0) target = $region57
    $region56: #{tpu_custom_call.1} parent=1 // pred_region
      _
    $region57: #{tpu_custom_call.1} parent=1 // pred_fallthru
      _
    // Predicated region
    $region58: #{tpu_custom_call.1} parent=1 // pred_check
      _
    $region59: #{tpu_custom_call.1} parent=1 // pred_check_branch
      %55 = sbr.rel (0) target = $region61
    $region60: #{tpu_custom_call.1} parent=1 // pred_region
      _
    $region61: #{tpu_custom_call.1} parent=1 // pred_fallthru
      _
    // Predicated region
    $region62: #{tpu_custom_call.1} parent=1 // pred_check
      _
    $region63: #{tpu_custom_call.1} parent=1 // pred_check_branch
      %57 = sbr.rel (0) target = $region65
    $region64: #{tpu_custom_call.1} parent=1 // pred_region
      _
    $region65: #{tpu_custom_call.1} parent=1 // pred_fallthru
      _
    // Predicated region
    $region66: #{tpu_custom_call.1} parent=1 // pred_check
      _
    $region67: #{tpu_custom_call.1} parent=1 // pred_check_branch
      %59 = sbr.rel (0) target = $region69
    $region68: #{tpu_custom_call.1} parent=1 // pred_region
      _
    $region69: #{tpu_custom_call.1} parent=1 // pred_fallthru
      _
    %v60 = vld [vmem:[%s0] sm:$0x3]
    %v61 = vld [vmem:[%s1] sm:$0xff]
    %v62 = vld [vmem:[%s1 + $0x8] sm:$0xff]
    %v63 = vld [vmem:[%s1 + $0x10] sm:$0xff]
    %v64 = vld [vmem:[%s1 + $0x18] sm:$0xff]
    %vm65 = vcmask 261120
    %v67 = vsel %vm65, %v60, 0
    %69 = vmatprep.subr.mxu0 0.0
    %70 = vmatpush1.msra.mxu0 %v61
    %71 = vmatprep.subr.mxu0 0.0
    %72 = vmatpush1.msra.mxu0 %v62
    %73 = vmatprep.subr.mxu0 0.0
    %74 = vmatpush1.msra.mxu0 %v63
    %75 = vmatprep.subr.mxu0 0.0
    %76 = vmatpush1.msra.mxu0 %v64
    %77 = vmatprep.subr.mxu0 0.0
    %78 = vmatpush1.msra.mxu0 0.0
    %79 = vmatprep.subr.mxu0 0.0
    %80 = vmatpush1.msra.mxu0 0.0
    %81 = vmatprep.subr.mxu0 0.0
    %82 = vmatpush1.msra.mxu0 0.0
    %83 = vmatprep.subr.mxu0 0.0
    %84 = vmatpush1.msra.mxu0 0.0
    %85 = vmatprep.subr.mxu0 0.0
    %86 = vmatpush1.msra.mxu0 0.0
    %87 = vmatprep.subr.mxu0 0.0
    %88 = vmatpush1.msra.mxu0 0.0
    %89 = vmatprep.subr.mxu0 0.0
    %90 = vmatpush1.msra.mxu0 0.0
    %91 = vmatprep.subr.mxu0 0.0
    %92 = vmatpush1.msra.mxu0 0.0
    %93 = vmatprep.subr.mxu0 0.0
    %94 = vmatpush1.msra.mxu0 0.0
    %95 = vmatprep.subr.mxu0 0.0
    %96 = vmatpush1.msra.mxu0 0.0
    %97 = vmatprep.subr.mxu0 0.0
    %98 = vmatpush1.msra.mxu0 0.0
    %99 = vmatprep.subr.mxu0 0.0
    %100 = vmatpush1.msra.mxu0 0.0
    %101 = vmatprep.subr.mxu0 0.0
    %102 = vmatpush1.msra.mxu0 0.0
    %103 = vmatprep.subr.mxu0 0.0
    %104 = vmatpush1.msra.mxu0 0.0
    %105 = vmatprep.subr.mxu0 0.0
    %106 = vmatpush1.msra.mxu0 0.0
    %107 = vmatprep.subr.mxu0 0.0
    %108 = vmatpush1.msra.mxu0 0.0
    %109 = vmatprep.subr.mxu0 0.0
    %110 = vmatpush1.msra.mxu0 0.0
    %111 = vmatprep.subr.mxu0 0.0
    %112 = vmatpush1.msra.mxu0 0.0
    %113 = vmatprep.subr.mxu0 0.0
    %114 = vmatpush1.msra.mxu0 0.0
    %115 = vmatprep.subr.mxu0 0.0
    %116 = vmatpush1.msra.mxu0 0.0
    %117 = vmatprep.subr.mxu0 0.0
    %118 = vmatpush1.msra.mxu0 0.0
    %119 = vmatprep.subr.mxu0 0.0
    %120 = vmatpush1.msra.mxu0 0.0
    %121 = vmatprep.subr.mxu0 0.0
    %122 = vmatpush1.msra.mxu0 0.0
    %123 = vmatprep.subr.mxu0 0.0
    %124 = vmatpush1.msra.mxu0 0.0
    %125 = vmatprep.subr.mxu0 0.0
    %126 = vmatpush1.msra.mxu0 0.0
    %127 = vmatprep.subr.mxu0 0.0
    %128 = vmatpush1.msra.mxu0 0.0
    %129 = vmatprep.subr.mxu0 0.0
    %130 = vmatpush1.msra.mxu0 0.0
    %131 = vmatprep.subr.mxu0 0.0
    %132 = vmatpush1.msra.mxu0 0.0
    %133 = vmatprep.mubr.f32.mxu0 0.0
    %134 = vmatmul.mubr.f32.gmra.mrb[0].mxu0 %v67
    %v135 = vpop.f32.mrb[0].mxu0
    %v136 = vadd.f32 0.0, %v135
    %v137 = vpop.f32.mrb[0].mxu0
    %138 = vdwg.mxu0
    %v139 = vld [vmem:[%s2] sm:$0xff]
    %v140 = vld [vmem:[%s3] sm:$0xff]
    %v141 = vld [vmem:[%s3 + $0x8] sm:$0xff]
    %v142 = vld [vmem:[%s3 + $0x10] sm:$0xff]
    %v143 = vld [vmem:[%s3 + $0x18] sm:$0xff]
    %v144 = vld [vmem:[%s3 + $0x20] sm:$0xff]
    %v145 = vld [vmem:[%s3 + $0x28] sm:$0xff]
    %v146 = vld [vmem:[%s3 + $0x30] sm:$0xff]
    %v147 = vld [vmem:[%s3 + $0x38] sm:$0xff]
    %v148 = vld [vmem:[%s3 + $0x40] sm:$0xff]
    %v149 = vld [vmem:[%s3 + $0x48] sm:$0xff]
    %v150 = vld [vmem:[%s3 + $0x50] sm:$0xff]
    %v151 = vld [vmem:[%s3 + $0x58] sm:$0xff]
    %v152 = vld [vmem:[%s3 + $0x60] sm:$0xff]
    %v153 = vld [vmem:[%s3 + $0x68] sm:$0xff]
    %v154 = vld [vmem:[%s3 + $0x70] sm:$0xff]
    %v155 = vld [vmem:[%s3 + $0x78] sm:$0xff]
    %156 = vmatprep.subr.mxu0 0.0
    %157 = vmatpush1.msra.mxu0 %v140
    %158 = vmatprep.subr.mxu0 0.0
    %159 = vmatpush1.msra.mxu0 %v141
    %160 = vmatprep.subr.mxu0 0.0
    %161 = vmatpush1.msra.mxu0 %v142
    %162 = vmatprep.subr.mxu0 0.0
    %163 = vmatpush1.msra.mxu0 %v143
    %164 = vmatprep.subr.mxu0 0.0
    %165 = vmatpush1.msra.mxu0 %v144
    %166 = vmatprep.subr.mxu0 0.0
    %167 = vmatpush1.msra.mxu0 %v145
    %168 = vmatprep.subr.mxu0 0.0
    %169 = vmatpush1.msra.mxu0 %v146
    %170 = vmatprep.subr.mxu0 0.0
    %171 = vmatpush1.msra.mxu0 %v147
    %172 = vmatprep.subr.mxu0 0.0
    %173 = vmatpush1.msra.mxu0 %v148
    %174 = vmatprep.subr.mxu0 0.0
    %175 = vmatpush1.msra.mxu0 %v149
    %176 = vmatprep.subr.mxu0 0.0
    %177 = vmatpush1.msra.mxu0 %v150
    %178 = vmatprep.subr.mxu0 0.0
    %179 = vmatpush1.msra.mxu0 %v151
    %180 = vmatprep.subr.mxu0 0.0
    %181 = vmatpush1.msra.mxu0 %v152
    %182 = vmatprep.subr.mxu0 0.0
    %183 = vmatpush1.msra.mxu0 %v153
    %184 = vmatprep.subr.mxu0 0.0
    %185 = vmatpush1.msra.mxu0 %v154
    %186 = vmatprep.subr.mxu0 0.0
    %187 = vmatpush1.msra.mxu0 %v155
    %188 = vmatprep.subr.mxu0 0.0
    %189 = vmatpush1.msra.mxu0 0.0
    %190 = vmatprep.subr.mxu0 0.0
    %191 = vmatpush1.msra.mxu0 0.0
    %192 = vmatprep.subr.mxu0 0.0
    %193 = vmatpush1.msra.mxu0 0.0
    %194 = vmatprep.subr.mxu0 0.0
    %195 = vmatpush1.msra.mxu0 0.0
    %196 = vmatprep.subr.mxu0 0.0
    %197 = vmatpush1.msra.mxu0 0.0
    %198 = vmatprep.subr.mxu0 0.0
    %199 = vmatpush1.msra.mxu0 0.0
    %200 = vmatprep.subr.mxu0 0.0
    %201 = vmatpush1.msra.mxu0 0.0
    %202 = vmatprep.subr.mxu0 0.0
    %203 = vmatpush1.msra.mxu0 0.0
    %204 = vmatprep.subr.mxu0 0.0
    %205 = vmatpush1.msra.mxu0 0.0
    %206 = vmatprep.subr.mxu0 0.0
    %207 = vmatpush1.msra.mxu0 0.0
    %208 = vmatprep.subr.mxu0 0.0
    %209 = vmatpush1.msra.mxu0 0.0
    %210 = vmatprep.subr.mxu0 0.0
    %211 = vmatpush1.msra.mxu0 0.0
    %212 = vmatprep.subr.mxu0 0.0
    %213 = vmatpush1.msra.mxu0 0.0
    %214 = vmatprep.subr.mxu0 0.0
    %215 = vmatpush1.msra.mxu0 0.0
    %216 = vmatprep.subr.mxu0 0.0
    %217 = vmatpush1.msra.mxu0 0.0
    %218 = vmatprep.subr.mxu0 0.0
    %219 = vmatpush1.msra.mxu0 0.0
    %220 = vmatprep.mubr.f32.mxu0 0.0
    %221 = vmatmul.mubr.f32.gmra.mrb[0].mxu0 %v139
    %v222 = vpop.f32.mrb[0].mxu0
    %v223 = vadd.f32 0.0, %v222
    %v224 = vpop.f32.mrb[0].mxu0
    %225 = vdwg.mxu0
    %v226 = vld [vmem:[%s8] sm:$0xff]
    %v227 = vld [vmem:[%s8 + $0x8] sm:$0xff]
    %v228 = vld [vmem:[%s8 + $0x10] sm:$0xff]
    %v229 = vld [vmem:[%s8 + $0x18] sm:$0xff]
    %v231 = vsel %vm65, %v136, 0
    %233 = vmatprep.subr.mxu0 0.0
    %234 = vmatpush1.msra.mxu0 %v226
    %235 = vmatprep.subr.mxu0 0.0
    %236 = vmatpush1.msra.mxu0 %v227
    %237 = vmatprep.subr.mxu0 0.0
    %238 = vmatpush1.msra.mxu0 %v228
    %239 = vmatprep.subr.mxu0 0.0
    %240 = vmatpush1.msra.mxu0 %v229
    %241 = vmatprep.subr.mxu0 0.0
    %242 = vmatpush1.msra.mxu0 0.0
    %243 = vmatprep.subr.mxu0 0.0
    %244 = vmatpush1.msra.mxu0 0.0
    %245 = vmatprep.subr.mxu0 0.0
    %246 = vmatpush1.msra.mxu0 0.0
    %247 = vmatprep.subr.mxu0 0.0
    %248 = vmatpush1.msra.mxu0 0.0
    %249 = vmatprep.subr.mxu0 0.0
    %250 = vmatpush1.msra.mxu0 0.0
    %251 = vmatprep.subr.mxu0 0.0
    %252 = vmatpush1.msra.mxu0 0.0
    %253 = vmatprep.subr.mxu0 0.0
    %254 = vmatpush1.msra.mxu0 0.0
    %255 = vmatprep.subr.mxu0 0.0
    %256 = vmatpush1.msra.mxu0 0.0
    %257 = vmatprep.subr.mxu0 0.0
    %258 = vmatpush1.msra.mxu0 0.0
    %259 = vmatprep.subr.mxu0 0.0
    %260 = vmatpush1.msra.mxu0 0.0
    %261 = vmatprep.subr.mxu0 0.0
    %262 = vmatpush1.msra.mxu0 0.0
    %263 = vmatprep.subr.mxu0 0.0
    %264 = vmatpush1.msra.mxu0 0.0
    %265 = vmatprep.subr.mxu0 0.0
    %266 = vmatpush1.msra.mxu0 0.0
    %267 = vmatprep.subr.mxu0 0.0
    %268 = vmatpush1.msra.mxu0 0.0
    %269 = vmatprep.subr.mxu0 0.0
    %270 = vmatpush1.msra.mxu0 0.0
    %271 = vmatprep.subr.mxu0 0.0
    %272 = vmatpush1.msra.mxu0 0.0
    %273 = vmatprep.subr.mxu0 0.0
    %274 = vmatpush1.msra.mxu0 0.0
    %275 = vmatprep.subr.mxu0 0.0
    %276 = vmatpush1.msra.mxu0 0.0
    %277 = vmatprep.subr.mxu0 0.0
    %278 = vmatpush1.msra.mxu0 0.0
    %279 = vmatprep.subr.mxu0 0.0
    %280 = vmatpush1.msra.mxu0 0.0
    %281 = vmatprep.subr.mxu0 0.0
    %282 = vmatpush1.msra.mxu0 0.0
    %283 = vmatprep.subr.mxu0 0.0
    %284 = vmatpush1.msra.mxu0 0.0
    %285 = vmatprep.subr.mxu0 0.0
    %286 = vmatpush1.msra.mxu0 0.0
    %287 = vmatprep.subr.mxu0 0.0
    %288 = vmatpush1.msra.mxu0 0.0
    %289 = vmatprep.subr.mxu0 0.0
    %290 = vmatpush1.msra.mxu0 0.0
    %291 = vmatprep.subr.mxu0 0.0
    %292 = vmatpush1.msra.mxu0 0.0
    %293 = vmatprep.subr.mxu0 0.0
    %294 = vmatpush1.msra.mxu0 0.0
    %295 = vmatprep.subr.mxu0 0.0
    %296 = vmatpush1.msra.mxu0 0.0
    %297 = vmatprep.mubr.f32.mxu0 0.0
    %298 = vmatmul.mubr.f32.gmra.mrb[0].mxu0 %v231
    %v299 = vpop.f32.mrb[0].mxu0
    %v300 = vadd.f32 0.0, %v299
    %v301 = vpop.f32.mrb[0].mxu0
    %302 = vdwg.mxu0
    %v303 = vld [vmem:[%s4] sm:$0xff]
    %v304 = vld [vmem:[%s9] sm:$0xff]
    %v305 = vld [vmem:[%s9 + $0x8] sm:$0xff]
    %v306 = vld [vmem:[%s9 + $0x10] sm:$0xff]
    %v307 = vld [vmem:[%s9 + $0x18] sm:$0xff]
    %v309 = vsel %vm65, %v223, 0
    %311 = vmatprep.subr.mxu0 0.0
    %312 = vmatpush1.msra.mxu0 %v304
    %313 = vmatprep.subr.mxu0 0.0
    %314 = vmatpush1.msra.mxu0 %v305
    %315 = vmatprep.subr.mxu0 0.0
    %316 = vmatpush1.msra.mxu0 %v306
    %317 = vmatprep.subr.mxu0 0.0
    %318 = vmatpush1.msra.mxu0 %v307
    %319 = vmatprep.subr.mxu0 0.0
    %320 = vmatpush1.msra.mxu0 0.0
    %321 = vmatprep.subr.mxu0 0.0
    %322 = vmatpush1.msra.mxu0 0.0
    %323 = vmatprep.subr.mxu0 0.0
    %324 = vmatpush1.msra.mxu0 0.0
    %325 = vmatprep.subr.mxu0 0.0
    %326 = vmatpush1.msra.mxu0 0.0
    %327 = vmatprep.subr.mxu0 0.0
    %328 = vmatpush1.msra.mxu0 0.0
    %329 = vmatprep.subr.mxu0 0.0
    %330 = vmatpush1.msra.mxu0 0.0
    %331 = vmatprep.subr.mxu0 0.0
    %332 = vmatpush1.msra.mxu0 0.0
    %333 = vmatprep.subr.mxu0 0.0
    %334 = vmatpush1.msra.mxu0 0.0
    %335 = vmatprep.subr.mxu0 0.0
    %336 = vmatpush1.msra.mxu0 0.0
    %337 = vmatprep.subr.mxu0 0.0
    %338 = vmatpush1.msra.mxu0 0.0
    %339 = vmatprep.subr.mxu0 0.0
    %340 = vmatpush1.msra.mxu0 0.0
    %341 = vmatprep.subr.mxu0 0.0
    %342 = vmatpush1.msra.mxu0 0.0
    %343 = vmatprep.subr.mxu0 0.0
    %344 = vmatpush1.msra.mxu0 0.0
    %345 = vmatprep.subr.mxu0 0.0
    %346 = vmatpush1.msra.mxu0 0.0
    %347 = vmatprep.subr.mxu0 0.0
    %348 = vmatpush1.msra.mxu0 0.0
    %349 = vmatprep.subr.mxu0 0.0
    %350 = vmatpush1.msra.mxu0 0.0
    %351 = vmatprep.subr.mxu0 0.0
    %352 = vmatpush1.msra.mxu0 0.0
    %353 = vmatprep.subr.mxu0 0.0
    %354 = vmatpush1.msra.mxu0 0.0
    %355 = vmatprep.subr.mxu0 0.0
    %356 = vmatpush1.msra.mxu0 0.0
    %357 = vmatprep.subr.mxu0 0.0
    %358 = vmatpush1.msra.mxu0 0.0
    %359 = vmatprep.subr.mxu0 0.0
    %360 = vmatpush1.msra.mxu0 0.0
    %361 = vmatprep.subr.mxu0 0.0
    %362 = vmatpush1.msra.mxu0 0.0
    %363 = vmatprep.subr.mxu0 0.0
    %364 = vmatpush1.msra.mxu0 0.0
    %365 = vmatprep.subr.mxu0 0.0
    %366 = vmatpush1.msra.mxu0 0.0
    %367 = vmatprep.subr.mxu0 0.0
    %368 = vmatpush1.msra.mxu0 0.0
    %369 = vmatprep.subr.mxu0 0.0
    %370 = vmatpush1.msra.mxu0 0.0
    %371 = vmatprep.subr.mxu0 0.0
    %372 = vmatpush1.msra.mxu0 0.0
    %373 = vmatprep.subr.mxu0 0.0
    %374 = vmatpush1.msra.mxu0 0.0
    %375 = vmatprep.mubr.f32.mxu0 0.0
    %376 = vmatmul.mubr.f32.gmra.mrb[0].mxu0 %v309
    %v377 = vpop.f32.mrb[0].mxu0
    %v378 = vadd.f32 0.0, %v377
    %v379 = vpop.f32.mrb[0].mxu0
    %380 = vdwg.mxu0
    %vm381 = vcmask 15360
    %v383 = vsel %vm381, %v303, 0
    %vm385 = vcmask 1041408
    %v387 = vsel %vm385, %v300, 0
    %389 = vmatprep.subr.mxu0 0.0
    %390 = vmatpush1.msra.mxu0 %v387
    %391 = vmatprep.subr.mxu0 0.0
    %392 = vmatpush1.msra.mxu0 0.0
    %393 = vmatprep.subr.mxu0 0.0
    %394 = vmatpush1.msra.mxu0 0.0
    %395 = vmatprep.subr.mxu0 0.0
    %396 = vmatpush1.msra.mxu0 0.0
    %397 = vmatprep.subr.mxu0 0.0
    %398 = vmatpush1.msra.mxu0 0.0
    %399 = vmatprep.subr.mxu0 0.0
    %400 = vmatpush1.msra.mxu0 0.0
    %401 = vmatprep.subr.mxu0 0.0
    %402 = vmatpush1.msra.mxu0 0.0
    %403 = vmatprep.subr.mxu0 0.0
    %404 = vmatpush1.msra.mxu0 0.0
    %405 = vmatprep.subr.mxu0 0.0
    %406 = vmatpush1.msra.mxu0 0.0
    %407 = vmatprep.subr.mxu0 0.0
    %408 = vmatpush1.msra.mxu0 0.0
    %409 = vmatprep.subr.mxu0 0.0
    %410 = vmatpush1.msra.mxu0 0.0
    %411 = vmatprep.subr.mxu0 0.0
    %412 = vmatpush1.msra.mxu0 0.0
    %413 = vmatprep.subr.mxu0 0.0
    %414 = vmatpush1.msra.mxu0 0.0
    %415 = vmatprep.subr.mxu0 0.0
    %416 = vmatpush1.msra.mxu0 0.0
    %417 = vmatprep.subr.mxu0 0.0
    %418 = vmatpush1.msra.mxu0 0.0
    %419 = vmatprep.subr.mxu0 0.0
    %420 = vmatpush1.msra.mxu0 0.0
    %421 = vmatprep.subr.mxu0 0.0
    %422 = vmatpush1.msra.mxu0 0.0
    %423 = vmatprep.subr.mxu0 0.0
    %424 = vmatpush1.msra.mxu0 0.0
    %425 = vmatprep.subr.mxu0 0.0
    %426 = vmatpush1.msra.mxu0 0.0
    %427 = vmatprep.subr.mxu0 0.0
    %428 = vmatpush1.msra.mxu0 0.0
    %429 = vmatprep.subr.mxu0 0.0
    %430 = vmatpush1.msra.mxu0 0.0
    %431 = vmatprep.subr.mxu0 0.0
    %432 = vmatpush1.msra.mxu0 0.0
    %433 = vmatprep.subr.mxu0 0.0
    %434 = vmatpush1.msra.mxu0 0.0
    %435 = vmatprep.subr.mxu0 0.0
    %436 = vmatpush1.msra.mxu0 0.0
    %437 = vmatprep.subr.mxu0 0.0
    %438 = vmatpush1.msra.mxu0 0.0
    %439 = vmatprep.subr.mxu0 0.0
    %440 = vmatpush1.msra.mxu0 0.0
    %441 = vmatprep.subr.mxu0 0.0
    %442 = vmatpush1.msra.mxu0 0.0
    %443 = vmatprep.subr.mxu0 0.0
    %444 = vmatpush1.msra.mxu0 0.0
    %445 = vmatprep.subr.mxu0 0.0
    %446 = vmatpush1.msra.mxu0 0.0
    %447 = vmatprep.subr.mxu0 0.0
    %448 = vmatpush1.msra.mxu0 0.0
    %449 = vmatprep.subr.mxu0 0.0
    %450 = vmatpush1.msra.mxu0 0.0
    %451 = vmatprep.subr.mxu0 0.0
    %452 = vmatpush1.msra.mxu0 0.0
    %453 = vmatprep.mubr.f32.mxu0 0.0
    %454 = vmatmul.mubr.f32.gmra.mrb[0].mxu0 %v383
    %v455 = vpop.f32.mrb[0].mxu0
    %v456 = vadd.f32 %v378, %v455
    %v457 = vpop.f32.mrb[0].mxu0
    %458 = vdwg.mxu0
    %v459 = vld [vmem:[%s10] sm:$0x1]
    %v461 = vlaneseq
    %v462 = vshrl.u32 %v461, 7
    %v463 = vsub.s32 0, %v462
    %v464 = vrot.slane %v459, %v463
    %v466 = vadd.f32 %v456, %v464
    %v467 = vtanh.pop %v466
    %v468 = vld [vmem:[%s11] sm:$0xff]
    %v469 = vld [vmem:[%s11 + $0x8] sm:$0xff]
    %v470 = vld [vmem:[%s11 + $0x10] sm:$0xff]
    %v471 = vld [vmem:[%s11 + $0x18] sm:$0xff]
    %v472 = vld [vmem:[%s11 + $0x20] sm:$0xff]
    %v473 = vld [vmem:[%s11 + $0x28] sm:$0xff]
    %v474 = vld [vmem:[%s11 + $0x30] sm:$0xff]
    %v475 = vld [vmem:[%s11 + $0x38] sm:$0xff]
    %vm476 = vcmask 523264
    %v478 = vsel %vm476, %v467, 0
    %480 = vmatprep.subr.mxu0 0.0
    %481 = vmatpush1.msra.mxu0 %v468
    %482 = vmatprep.subr.mxu0 0.0
    %483 = vmatpush1.msra.mxu0 %v469
    %484 = vmatprep.subr.mxu0 0.0
    %485 = vmatpush1.msra.mxu0 %v470
    %486 = vmatprep.subr.mxu0 0.0
    %487 = vmatpush1.msra.mxu0 %v471
    %488 = vmatprep.subr.mxu0 0.0
    %489 = vmatpush1.msra.mxu0 %v472
    %490 = vmatprep.subr.mxu0 0.0
    %491 = vmatpush1.msra.mxu0 %v473
    %492 = vmatprep.subr.mxu0 0.0
    %493 = vmatpush1.msra.mxu0 %v474
    %494 = vmatprep.subr.mxu0 0.0
    %495 = vmatpush1.msra.mxu0 %v475
    %496 = vmatprep.subr.mxu0 0.0
    %497 = vmatpush1.msra.mxu0 0.0
    %498 = vmatprep.subr.mxu0 0.0
    %499 = vmatpush1.msra.mxu0 0.0
    %500 = vmatprep.subr.mxu0 0.0
    %501 = vmatpush1.msra.mxu0 0.0
    %502 = vmatprep.subr.mxu0 0.0
    %503 = vmatpush1.msra.mxu0 0.0
    %504 = vmatprep.subr.mxu0 0.0
    %505 = vmatpush1.msra.mxu0 0.0
    %506 = vmatprep.subr.mxu0 0.0
    %507 = vmatpush1.msra.mxu0 0.0
    %508 = vmatprep.subr.mxu0 0.0
    %509 = vmatpush1.msra.mxu0 0.0
    %510 = vmatprep.subr.mxu0 0.0
    %511 = vmatpush1.msra.mxu0 0.0
    %512 = vmatprep.subr.mxu0 0.0
    %513 = vmatpush1.msra.mxu0 0.0
    %514 = vmatprep.subr.mxu0 0.0
    %515 = vmatpush1.msra.mxu0 0.0
    %516 = vmatprep.subr.mxu0 0.0
    %517 = vmatpush1.msra.mxu0 0.0
    %518 = vmatprep.subr.mxu0 0.0
    %519 = vmatpush1.msra.mxu0 0.0
    %520 = vmatprep.subr.mxu0 0.0
    %521 = vmatpush1.msra.mxu0 0.0
    %522 = vmatprep.subr.mxu0 0.0
    %523 = vmatpush1.msra.mxu0 0.0
    %524 = vmatprep.subr.mxu0 0.0
    %525 = vmatpush1.msra.mxu0 0.0
    %526 = vmatprep.subr.mxu0 0.0
    %527 = vmatpush1.msra.mxu0 0.0
    %528 = vmatprep.subr.mxu0 0.0
    %529 = vmatpush1.msra.mxu0 0.0
    %530 = vmatprep.subr.mxu0 0.0
    %531 = vmatpush1.msra.mxu0 0.0
    %532 = vmatprep.subr.mxu0 0.0
    %533 = vmatpush1.msra.mxu0 0.0
    %534 = vmatprep.subr.mxu0 0.0
    %535 = vmatpush1.msra.mxu0 0.0
    %536 = vmatprep.subr.mxu0 0.0
    %537 = vmatpush1.msra.mxu0 0.0
    %538 = vmatprep.subr.mxu0 0.0
    %539 = vmatpush1.msra.mxu0 0.0
    %540 = vmatprep.subr.mxu0 0.0
    %541 = vmatpush1.msra.mxu0 0.0
    %542 = vmatprep.subr.mxu0 0.0
    %543 = vmatpush1.msra.mxu0 0.0
    %544 = vmatprep.mubr.f32.mxu0 0.0
    %545 = vmatmul.mubr.f32.gmra.mrb[0].mxu0 %v478
    %v546 = vpop.f32.mrb[0].mxu0
    %v547 = vadd.f32 0.0, %v546
    %v548 = vpop.f32.mrb[0].mxu0
    %549 = vdwg.mxu0
    %vm550 = vcmask 7168
    %v551 = vsel %vm550, %v547, -inf
    %v552 = vrot.slane %v551, 4
    %v553 = vmax.f32 %v551, %v552
    %v554 = vrot.slane %v553, 2
    %v555 = vmax.f32 %v553, %v554
    %v556 = vrot.slane %v555, 1
    %v557 = vmax.f32 %v555, %v556
    %v558 = vsub.f32 %v547, %v557
    %v559 = vmul.f32 %v558, 1.442695
    %v560 = vpow.pop %v559
    %v561 = vld [vmem:[%s7] sm:$0xff]
    %v562 = vmul.f32 %v560, %v561
    %v563 = vld [vmem:[%s5] sm:$0x3]
    %vm564 = vcmask 64512
    %v566 = vsel %vm564, %v563, 0
    %568 = vmatprep.subr.mxu0 0.0
    %569 = vmatpush1.msra.mxu0 %v562
    %570 = vmatprep.subr.mxu0 0.0
    %571 = vmatpush1.msra.mxu0 0.0
    %572 = vmatprep.subr.mxu0 0.0
    %573 = vmatpush1.msra.mxu0 0.0
    %574 = vmatprep.subr.mxu0 0.0
    %575 = vmatpush1.msra.mxu0 0.0
    %576 = vmatprep.subr.mxu0 0.0
    %577 = vmatpush1.msra.mxu0 0.0
    %578 = vmatprep.subr.mxu0 0.0
    %579 = vmatpush1.msra.mxu0 0.0
    %580 = vmatprep.subr.mxu0 0.0
    %581 = vmatpush1.msra.mxu0 0.0
    %582 = vmatprep.subr.mxu0 0.0
    %583 = vmatpush1.msra.mxu0 0.0
    %584 = vmatprep.subr.mxu0 0.0
    %585 = vmatpush1.msra.mxu0 0.0
    %586 = vmatprep.subr.mxu0 0.0
    %587 = vmatpush1.msra.mxu0 0.0
    %588 = vmatprep.subr.mxu0 0.0
    %589 = vmatpush1.msra.mxu0 0.0
    %590 = vmatprep.subr.mxu0 0.0
    %591 = vmatpush1.msra.mxu0 0.0
    %592 = vmatprep.subr.mxu0 0.0
    %593 = vmatpush1.msra.mxu0 0.0
    %594 = vmatprep.subr.mxu0 0.0
    %595 = vmatpush1.msra.mxu0 0.0
    %596 = vmatprep.subr.mxu0 0.0
    %597 = vmatpush1.msra.mxu0 0.0
    %598 = vmatprep.subr.mxu0 0.0
    %599 = vmatpush1.msra.mxu0 0.0
    %600 = vmatprep.subr.mxu0 0.0
    %601 = vmatpush1.msra.mxu0 0.0
    %602 = vmatprep.subr.mxu0 0.0
    %603 = vmatpush1.msra.mxu0 0.0
    %604 = vmatprep.subr.mxu0 0.0
    %605 = vmatpush1.msra.mxu0 0.0
    %606 = vmatprep.subr.mxu0 0.0
    %607 = vmatpush1.msra.mxu0 0.0
    %608 = vmatprep.subr.mxu0 0.0
    %609 = vmatpush1.msra.mxu0 0.0
    %610 = vmatprep.subr.mxu0 0.0
    %611 = vmatpush1.msra.mxu0 0.0
    %612 = vmatprep.subr.mxu0 0.0
    %613 = vmatpush1.msra.mxu0 0.0
    %614 = vmatprep.subr.mxu0 0.0
    %615 = vmatpush1.msra.mxu0 0.0
    %616 = vmatprep.subr.mxu0 0.0
    %617 = vmatpush1.msra.mxu0 0.0
    %618 = vmatprep.subr.mxu0 0.0
    %619 = vmatpush1.msra.mxu0 0.0
    %620 = vmatprep.subr.mxu0 0.0
    %621 = vmatpush1.msra.mxu0 0.0
    %622 = vmatprep.subr.mxu0 0.0
    %623 = vmatpush1.msra.mxu0 0.0
    %624 = vmatprep.subr.mxu0 0.0
    %625 = vmatpush1.msra.mxu0 0.0
    %626 = vmatprep.subr.mxu0 0.0
    %627 = vmatpush1.msra.mxu0 0.0
    %628 = vmatprep.subr.mxu0 0.0
    %629 = vmatpush1.msra.mxu0 0.0
    %630 = vmatprep.subr.mxu0 0.0
    %631 = vmatpush1.msra.mxu0 0.0
    %632 = vmatprep.mubr.f32.mxu0 0.0
    %633 = vmatmul.mubr.f32.gmra.mrb[0].mxu0 %v566
    %v634 = vpop.f32.mrb[0].mxu0
    %v635 = vadd.f32 0.0, %v634
    %v636 = vpop.f32.mrb[0].mxu0
    %637 = vdwg.mxu0
    %v638 = vrcp.pop %v635
    %640 = vset.pattern.permute.xlu0 0
    %641 = vperm.xlu0 %640, %v562
    %v642 = vpop.permute.xlu0 %641
    %v644 = vmul.f32 %v642, %v223
    %645 = vmatprep.subr.mxu0 0.0
    %646 = vmatpush1.msra.mxu0 %v644
    %647 = vmatprep.subr.mxu0 0.0
    %648 = vmatpush1.msra.mxu0 0.0
    %649 = vmatprep.subr.mxu0 0.0
    %650 = vmatpush1.msra.mxu0 0.0
    %651 = vmatprep.subr.mxu0 0.0
    %652 = vmatpush1.msra.mxu0 0.0
    %653 = vmatprep.subr.mxu0 0.0
    %654 = vmatpush1.msra.mxu0 0.0
    %655 = vmatprep.subr.mxu0 0.0
    %656 = vmatpush1.msra.mxu0 0.0
    %657 = vmatprep.subr.mxu0 0.0
    %658 = vmatpush1.msra.mxu0 0.0
    %659 = vmatprep.subr.mxu0 0.0
    %660 = vmatpush1.msra.mxu0 0.0
    %661 = vmatprep.subr.mxu0 0.0
    %662 = vmatpush1.msra.mxu0 0.0
    %663 = vmatprep.subr.mxu0 0.0
    %664 = vmatpush1.msra.mxu0 0.0
    %665 = vmatprep.subr.mxu0 0.0
    %666 = vmatpush1.msra.mxu0 0.0
    %667 = vmatprep.subr.mxu0 0.0
    %668 = vmatpush1.msra.mxu0 0.0
    %669 = vmatprep.subr.mxu0 0.0
    %670 = vmatpush1.msra.mxu0 0.0
    %671 = vmatprep.subr.mxu0 0.0
    %672 = vmatpush1.msra.mxu0 0.0
    %673 = vmatprep.subr.mxu0 0.0
    %674 = vmatpush1.msra.mxu0 0.0
    %675 = vmatprep.subr.mxu0 0.0
    %676 = vmatpush1.msra.mxu0 0.0
    %677 = vmatprep.subr.mxu0 0.0
    %678 = vmatpush1.msra.mxu0 0.0
    %679 = vmatprep.subr.mxu0 0.0
    %680 = vmatpush1.msra.mxu0 0.0
    %681 = vmatprep.subr.mxu0 0.0
    %682 = vmatpush1.msra.mxu0 0.0
    %683 = vmatprep.subr.mxu0 0.0
    %684 = vmatpush1.msra.mxu0 0.0
    %685 = vmatprep.subr.mxu0 0.0
    %686 = vmatpush1.msra.mxu0 0.0
    %687 = vmatprep.subr.mxu0 0.0
    %688 = vmatpush1.msra.mxu0 0.0
    %689 = vmatprep.subr.mxu0 0.0
    %690 = vmatpush1.msra.mxu0 0.0
    %691 = vmatprep.subr.mxu0 0.0
    %692 = vmatpush1.msra.mxu0 0.0
    %693 = vmatprep.subr.mxu0 0.0
    %694 = vmatpush1.msra.mxu0 0.0
    %695 = vmatprep.subr.mxu0 0.0
    %696 = vmatpush1.msra.mxu0 0.0
    %697 = vmatprep.subr.mxu0 0.0
    %698 = vmatpush1.msra.mxu0 0.0
    %699 = vmatprep.subr.mxu0 0.0
    %700 = vmatpush1.msra.mxu0 0.0
    %701 = vmatprep.subr.mxu0 0.0
    %702 = vmatpush1.msra.mxu0 0.0
    %703 = vmatprep.subr.mxu0 0.0
    %704 = vmatpush1.msra.mxu0 0.0
    %705 = vmatprep.subr.mxu0 0.0
    %706 = vmatpush1.msra.mxu0 0.0
    %707 = vmatprep.subr.mxu0 0.0
    %708 = vmatpush1.msra.mxu0 0.0
    %709 = vmatprep.mubr.f32.mxu0 0.0
    %710 = vmatmul.mubr.f32.gmra.mrb[0].mxu0 %v566
    %v711 = vpop.f32.mrb[0].mxu0
    %v712 = vadd.f32 0.0, %v711
    %v713 = vpop.f32.mrb[0].mxu0
    %714 = vdwg.mxu0
    %716 = vset.pattern.permute.xlu0 0
    %717 = vperm.xlu0 %716, %v638
    %v718 = vpop.permute.xlu0 %717
    %v720 = vmul.f32 %v718, %v712
    %v721 = vld [vmem:[%s6] sm:$0xff]
    %v722 = vmul.f32 %v642, %v721
    %723 = vmatprep.subr.mxu0 0.0
    %724 = vmatpush1.msra.mxu0 %v722
    %725 = vmatprep.subr.mxu0 0.0
    %726 = vmatpush1.msra.mxu0 0.0
    %727 = vmatprep.subr.mxu0 0.0
    %728 = vmatpush1.msra.mxu0 0.0
    %729 = vmatprep.subr.mxu0 0.0
    %730 = vmatpush1.msra.mxu0 0.0
    %731 = vmatprep.subr.mxu0 0.0
    %732 = vmatpush1.msra.mxu0 0.0
    %733 = vmatprep.subr.mxu0 0.0
    %734 = vmatpush1.msra.mxu0 0.0
    %735 = vmatprep.subr.mxu0 0.0
    %736 = vmatpush1.msra.mxu0 0.0
    %737 = vmatprep.subr.mxu0 0.0
    %738 = vmatpush1.msra.mxu0 0.0
    %739 = vmatprep.subr.mxu0 0.0
    %740 = vmatpush1.msra.mxu0 0.0
    %741 = vmatprep.subr.mxu0 0.0
    %742 = vmatpush1.msra.mxu0 0.0
    %743 = vmatprep.subr.mxu0 0.0
    %744 = vmatpush1.msra.mxu0 0.0
    %745 = vmatprep.subr.mxu0 0.0
    %746 = vmatpush1.msra.mxu0 0.0
    %747 = vmatprep.subr.mxu0 0.0
    %748 = vmatpush1.msra.mxu0 0.0
    %749 = vmatprep.subr.mxu0 0.0
    %750 = vmatpush1.msra.mxu0 0.0
    %751 = vmatprep.subr.mxu0 0.0
    %752 = vmatpush1.msra.mxu0 0.0
    %753 = vmatprep.subr.mxu0 0.0
    %754 = vmatpush1.msra.mxu0 0.0
    %755 = vmatprep.subr.mxu0 0.0
    %756 = vmatpush1.msra.mxu0 0.0
    %757 = vmatprep.subr.mxu0 0.0
    %758 = vmatpush1.msra.mxu0 0.0
    %759 = vmatprep.subr.mxu0 0.0
    %760 = vmatpush1.msra.mxu0 0.0
    %761 = vmatprep.subr.mxu0 0.0
    %762 = vmatpush1.msra.mxu0 0.0
    %763 = vmatprep.subr.mxu0 0.0
    %764 = vmatpush1.msra.mxu0 0.0
    %765 = vmatprep.subr.mxu0 0.0
    %766 = vmatpush1.msra.mxu0 0.0
    %767 = vmatprep.subr.mxu0 0.0
    %768 = vmatpush1.msra.mxu0 0.0
    %769 = vmatprep.subr.mxu0 0.0
    %770 = vmatpush1.msra.mxu0 0.0
    %771 = vmatprep.subr.mxu0 0.0
    %772 = vmatpush1.msra.mxu0 0.0
    %773 = vmatprep.subr.mxu0 0.0
    %774 = vmatpush1.msra.mxu0 0.0
    %775 = vmatprep.subr.mxu0 0.0
    %776 = vmatpush1.msra.mxu0 0.0
    %777 = vmatprep.subr.mxu0 0.0
    %778 = vmatpush1.msra.mxu0 0.0
    %779 = vmatprep.subr.mxu0 0.0
    %780 = vmatpush1.msra.mxu0 0.0
    %781 = vmatprep.subr.mxu0 0.0
    %782 = vmatpush1.msra.mxu0 0.0
    %783 = vmatprep.subr.mxu0 0.0
    %784 = vmatpush1.msra.mxu0 0.0
    %785 = vmatprep.subr.mxu0 0.0
    %786 = vmatpush1.msra.mxu0 0.0
    %787 = vmatprep.mubr.f32.mxu0 0.0
    %788 = vmatmul.mubr.f32.gmra.mrb[0].mxu0 %v566
    %v789 = vpop.f32.mrb[0].mxu0
    %v790 = vadd.f32 0.0, %v789
    %v791 = vpop.f32.mrb[0].mxu0
    %792 = vdwg.mxu0
    %v793 = vmul.f32 %v718, %v790
    %vm794 = vcmask 25600
    %795 = vst.msk [vmem:[#allocation4] sm:$0x3] %vm794, %v793
    %v796 = vld [vmem:[%s12] sm:$0xff]
    %v797 = vld [vmem:[%s12 + $0x8] sm:$0xff]
    %v798 = vld [vmem:[%s12 + $0x10] sm:$0xff]
    %v799 = vld [vmem:[%s12 + $0x18] sm:$0xff]
    %v800 = vld [vmem:[%s13] sm:$0xff]
    %v801 = vld [vmem:[%s13 + $0x8] sm:$0xff]
    %v802 = vld [vmem:[%s13 + $0x10] sm:$0xff]
    %v803 = vld [vmem:[%s13 + $0x18] sm:$0xff]
    %v805 = vsel %vm65, %v720, 0
    %807 = vmatprep.subr.mxu0 0.0
    %808 = vmatpush1.msra.mxu0 %v800
    %809 = vmatprep.subr.mxu0 0.0
    %810 = vmatpush1.msra.mxu0 %v801
    %811 = vmatprep.subr.mxu0 0.0
    %812 = vmatpush1.msra.mxu0 %v802
    %813 = vmatprep.subr.mxu0 0.0
    %814 = vmatpush1.msra.mxu0 %v803
    %815 = vmatprep.subr.mxu0 0.0
    %816 = vmatpush1.msra.mxu0 0.0
    %817 = vmatprep.subr.mxu0 0.0
    %818 = vmatpush1.msra.mxu0 0.0
    %819 = vmatprep.subr.mxu0 0.0
    %820 = vmatpush1.msra.mxu0 0.0
    %821 = vmatprep.subr.mxu0 0.0
    %822 = vmatpush1.msra.mxu0 0.0
    %823 = vmatprep.subr.mxu0 0.0
    %824 = vmatpush1.msra.mxu0 0.0
    %825 = vmatprep.subr.mxu0 0.0
    %826 = vmatpush1.msra.mxu0 0.0
    %827 = vmatprep.subr.mxu0 0.0
    %828 = vmatpush1.msra.mxu0 0.0
    %829 = vmatprep.subr.mxu0 0.0
    %830 = vmatpush1.msra.mxu0 0.0
    %831 = vmatprep.subr.mxu0 0.0
    %832 = vmatpush1.msra.mxu0 0.0
    %833 = vmatprep.subr.mxu0 0.0
    %834 = vmatpush1.msra.mxu0 0.0
    %835 = vmatprep.subr.mxu0 0.0
    %836 = vmatpush1.msra.mxu0 0.0
    %837 = vmatprep.subr.mxu0 0.0
    %838 = vmatpush1.msra.mxu0 0.0
    %839 = vmatprep.subr.mxu0 0.0
    %840 = vmatpush1.msra.mxu0 0.0
    %841 = vmatprep.subr.mxu0 0.0
    %842 = vmatpush1.msra.mxu0 0.0
    %843 = vmatprep.subr.mxu0 0.0
    %844 = vmatpush1.msra.mxu0 0.0
    %845 = vmatprep.subr.mxu0 0.0
    %846 = vmatpush1.msra.mxu0 0.0
    %847 = vmatprep.subr.mxu0 0.0
    %848 = vmatpush1.msra.mxu0 0.0
    %849 = vmatprep.subr.mxu0 0.0
    %850 = vmatpush1.msra.mxu0 0.0
    %851 = vmatprep.subr.mxu0 0.0
    %852 = vmatpush1.msra.mxu0 0.0
    %853 = vmatprep.subr.mxu0 0.0
    %854 = vmatpush1.msra.mxu0 0.0
    %855 = vmatprep.subr.mxu0 0.0
    %856 = vmatpush1.msra.mxu0 0.0
    %857 = vmatprep.subr.mxu0 0.0
    %858 = vmatpush1.msra.mxu0 0.0
    %859 = vmatprep.subr.mxu0 0.0
    %860 = vmatpush1.msra.mxu0 0.0
    %861 = vmatprep.subr.mxu0 0.0
    %862 = vmatpush1.msra.mxu0 0.0
    %863 = vmatprep.subr.mxu0 0.0
    %864 = vmatpush1.msra.mxu0 0.0
    %865 = vmatprep.subr.mxu0 0.0
    %866 = vmatpush1.msra.mxu0 0.0
    %867 = vmatprep.subr.mxu0 0.0
    %868 = vmatpush1.msra.mxu0 0.0
    %869 = vmatprep.subr.mxu0 0.0
    %870 = vmatpush1.msra.mxu0 0.0
    %871 = vmatprep.mubr.f32.mxu0 0.0
    %872 = vmatmul.mubr.f32.gmra.mrb[0].mxu0 %v805
    %v873 = vpop.f32.mrb[0].mxu0
    %v874 = vadd.f32 0.0, %v873
    %v875 = vpop.f32.mrb[0].mxu0
    %876 = vdwg.mxu0
    %877 = vmatprep.subr.mxu0 0.0
    %878 = vmatpush1.msra.mxu0 %v796
    %879 = vmatprep.subr.mxu0 0.0
    %880 = vmatpush1.msra.mxu0 %v797
    %881 = vmatprep.subr.mxu0 0.0
    %882 = vmatpush1.msra.mxu0 %v798
    %883 = vmatprep.subr.mxu0 0.0
    %884 = vmatpush1.msra.mxu0 %v799
    %885 = vmatprep.subr.mxu0 0.0
    %886 = vmatpush1.msra.mxu0 0.0
    %887 = vmatprep.subr.mxu0 0.0
    %888 = vmatpush1.msra.mxu0 0.0
    %889 = vmatprep.subr.mxu0 0.0
    %890 = vmatpush1.msra.mxu0 0.0
    %891 = vmatprep.subr.mxu0 0.0
    %892 = vmatpush1.msra.mxu0 0.0
    %893 = vmatprep.subr.mxu0 0.0
    %894 = vmatpush1.msra.mxu0 0.0
    %895 = vmatprep.subr.mxu0 0.0
    %896 = vmatpush1.msra.mxu0 0.0
    %897 = vmatprep.subr.mxu0 0.0
    %898 = vmatpush1.msra.mxu0 0.0
    %899 = vmatprep.subr.mxu0 0.0
    %900 = vmatpush1.msra.mxu0 0.0
    %901 = vmatprep.subr.mxu0 0.0
    %902 = vmatpush1.msra.mxu0 0.0
    %903 = vmatprep.subr.mxu0 0.0
    %904 = vmatpush1.msra.mxu0 0.0
    %905 = vmatprep.subr.mxu0 0.0
    %906 = vmatpush1.msra.mxu0 0.0
    %907 = vmatprep.subr.mxu0 0.0
    %908 = vmatpush1.msra.mxu0 0.0
    %909 = vmatprep.subr.mxu0 0.0
    %910 = vmatpush1.msra.mxu0 0.0
    %911 = vmatprep.subr.mxu0 0.0
    %912 = vmatpush1.msra.mxu0 0.0
    %913 = vmatprep.subr.mxu0 0.0
    %914 = vmatpush1.msra.mxu0 0.0
    %915 = vmatprep.subr.mxu0 0.0
    %916 = vmatpush1.msra.mxu0 0.0
    %917 = vmatprep.subr.mxu0 0.0
    %918 = vmatpush1.msra.mxu0 0.0
    %919 = vmatprep.subr.mxu0 0.0
    %920 = vmatpush1.msra.mxu0 0.0
    %921 = vmatprep.subr.mxu0 0.0
    %922 = vmatpush1.msra.mxu0 0.0
    %923 = vmatprep.subr.mxu0 0.0
    %924 = vmatpush1.msra.mxu0 0.0
    %925 = vmatprep.subr.mxu0 0.0
    %926 = vmatpush1.msra.mxu0 0.0
    %927 = vmatprep.subr.mxu0 0.0
    %928 = vmatpush1.msra.mxu0 0.0
    %929 = vmatprep.subr.mxu0 0.0
    %930 = vmatpush1.msra.mxu0 0.0
    %931 = vmatprep.subr.mxu0 0.0
    %932 = vmatpush1.msra.mxu0 0.0
    %933 = vmatprep.subr.mxu0 0.0
    %934 = vmatpush1.msra.mxu0 0.0
    %935 = vmatprep.subr.mxu0 0.0
    %936 = vmatpush1.msra.mxu0 0.0
    %937 = vmatprep.subr.mxu0 0.0
    %938 = vmatpush1.msra.mxu0 0.0
    %939 = vmatprep.subr.mxu0 0.0
    %940 = vmatpush1.msra.mxu0 0.0
    %941 = vmatprep.mubr.f32.mxu0 0.0
    %942 = vmatmul.mubr.f32.gmra.mrb[0].mxu0 %v231
    %v943 = vpop.f32.mrb[0].mxu0
    %v944 = vadd.f32 %v874, %v943
    %v945 = vpop.f32.mrb[0].mxu0
    %946 = vdwg.mxu0
    %v947 = vld [vmem:[%s14] sm:$0x1]
    %v949 = vlaneseq
    %v950 = vshrl.u32 %v949, 7
    %v951 = vsub.s32 0, %v950
    %v952 = vrot.slane %v947, %v951
    %v954 = vadd.f32 %v944, %v952
    %v955 = vmax.f32 %v954, 0.0
    %v956 = vld [vmem:[%s15] sm:$0xff]
    %v957 = vld [vmem:[%s15 + $0x8] sm:$0xff]
    %v958 = vld [vmem:[%s15 + $0x10] sm:$0xff]
    %v959 = vld [vmem:[%s15 + $0x18] sm:$0xff]
    %v960 = vld [vmem:[%s15 + $0x20] sm:$0xff]
    %v961 = vld [vmem:[%s15 + $0x28] sm:$0xff]
    %v962 = vld [vmem:[%s15 + $0x30] sm:$0xff]
    %v963 = vld [vmem:[%s15 + $0x38] sm:$0xff]
    %v964 = vld [vmem:[%s16] sm:$0x1]
    %v966 = vlaneseq
    %v967 = vshrl.u32 %v966, 7
    %v968 = vsub.s32 0, %v967
    %v969 = vrot.slane %v964, %v968
    %v972 = vsel %vm476, %v955, 0
    %974 = vmatprep.subr.mxu0 0.0
    %975 = vmatpush1.msra.mxu0 %v956
    %976 = vmatprep.subr.mxu0 0.0
    %977 = vmatpush1.msra.mxu0 %v957
    %978 = vmatprep.subr.mxu0 0.0
    %979 = vmatpush1.msra.mxu0 %v958
    %980 = vmatprep.subr.mxu0 0.0
    %981 = vmatpush1.msra.mxu0 %v959
    %982 = vmatprep.subr.mxu0 0.0
    %983 = vmatpush1.msra.mxu0 %v960
    %984 = vmatprep.subr.mxu0 0.0
    %985 = vmatpush1.msra.mxu0 %v961
    %986 = vmatprep.subr.mxu0 0.0
    %987 = vmatpush1.msra.mxu0 %v962
    %988 = vmatprep.subr.mxu0 0.0
    %989 = vmatpush1.msra.mxu0 %v963
    %990 = vmatprep.subr.mxu0 0.0
    %991 = vmatpush1.msra.mxu0 0.0
    %992 = vmatprep.subr.mxu0 0.0
    %993 = vmatpush1.msra.mxu0 0.0
    %994 = vmatprep.subr.mxu0 0.0
    %995 = vmatpush1.msra.mxu0 0.0
    %996 = vmatprep.subr.mxu0 0.0
    %997 = vmatpush1.msra.mxu0 0.0
    %998 = vmatprep.subr.mxu0 0.0
    %999 = vmatpush1.msra.mxu0 0.0
    %1000 = vmatprep.subr.mxu0 0.0
    %1001 = vmatpush1.msra.mxu0 0.0
    %1002 = vmatprep.subr.mxu0 0.0
    %1003 = vmatpush1.msra.mxu0 0.0
    %1004 = vmatprep.subr.mxu0 0.0
    %1005 = vmatpush1.msra.mxu0 0.0
    %1006 = vmatprep.subr.mxu0 0.0
    %1007 = vmatpush1.msra.mxu0 0.0
    %1008 = vmatprep.subr.mxu0 0.0
    %1009 = vmatpush1.msra.mxu0 0.0
    %1010 = vmatprep.subr.mxu0 0.0
    %1011 = vmatpush1.msra.mxu0 0.0
    %1012 = vmatprep.subr.mxu0 0.0
    %1013 = vmatpush1.msra.mxu0 0.0
    %1014 = vmatprep.subr.mxu0 0.0
    %1015 = vmatpush1.msra.mxu0 0.0
    %1016 = vmatprep.subr.mxu0 0.0
    %1017 = vmatpush1.msra.mxu0 0.0
    %1018 = vmatprep.subr.mxu0 0.0
    %1019 = vmatpush1.msra.mxu0 0.0
    %1020 = vmatprep.subr.mxu0 0.0
    %1021 = vmatpush1.msra.mxu0 0.0
    %1022 = vmatprep.subr.mxu0 0.0
    %1023 = vmatpush1.msra.mxu0 0.0
    %1024 = vmatprep.subr.mxu0 0.0
    %1025 = vmatpush1.msra.mxu0 0.0
    %1026 = vmatprep.subr.mxu0 0.0
    %1027 = vmatpush1.msra.mxu0 0.0
    %1028 = vmatprep.subr.mxu0 0.0
    %1029 = vmatpush1.msra.mxu0 0.0
    %1030 = vmatprep.subr.mxu0 0.0
    %1031 = vmatpush1.msra.mxu0 0.0
    %1032 = vmatprep.subr.mxu0 0.0
    %1033 = vmatpush1.msra.mxu0 0.0
    %1034 = vmatprep.subr.mxu0 0.0
    %1035 = vmatpush1.msra.mxu0 0.0
    %1036 = vmatprep.subr.mxu0 0.0
    %1037 = vmatpush1.msra.mxu0 0.0
    %1038 = vmatprep.mubr.f32.mxu0 0.0
    %1039 = vmatmul.mubr.f32.gmra.mrb[0].mxu0 %v972
    %v1040 = vpop.f32.mrb[0].mxu0
    %v1041 = vadd.f32 %v969, %v1040
    %v1042 = vpop.f32.mrb[0].mxu0
    %1043 = vdwg.mxu0
    %vm1044 = vcmask 254976
    %1045 = vst.msk [vmem:[#allocation2] sm:$0x3] %vm1044, %v1041
    // Predicated region
    $region70: #{tpu_custom_call.1} parent=1 // pred_check
      _
    $region71: #{tpu_custom_call.1} parent=1 // pred_check_branch
      %1047 = sbr.rel (0) target = $region73
    $region72: #{tpu_custom_call.1} parent=1 // pred_region
      %s1049 = ssub.s32 32, 32
      %1050 = vsyncadd [#allocation3], %s1049
      %s1052 = sshll.u32 [#allocation2], 4
      %s1053 = int_to_ptr.vmem [resolvable:$true] %s1052
      %1055 = dma.vmem_to_hbm [thread:$0]  %s1053, 32, %s17, [#allocation3]
    $region73: #{tpu_custom_call.1} parent=1 // pred_fallthru
      _
    // Predicated region
    $region74: #{tpu_custom_call.1} parent=1 // pred_check
      _
    $region75: #{tpu_custom_call.1} parent=1 // pred_check_branch
      %1057 = sbr.rel (0) target = $region77
    $region76: #{tpu_custom_call.1} parent=1 // pred_region
      %s1059 = ssub.s32 32, 32
      %1060 = vsyncadd [#allocation5], %s1059
      %s1062 = sshll.u32 [#allocation4], 4
      %s1063 = int_to_ptr.vmem [resolvable:$true] %s1062
      %1065 = dma.vmem_to_hbm [thread:$0]  %s1063, 32, %s18, [#allocation5]
    $region77: #{tpu_custom_call.1} parent=1 // pred_fallthru
      _
    // Predicated region
    $region78: #{tpu_custom_call.1} parent=1 // pred_check
      _
    $region79: #{tpu_custom_call.1} parent=1 // pred_check_branch
      %1067 = sbr.rel (0) target = $region81
    $region80: #{tpu_custom_call.1} parent=1 // pred_region
      %1068 = dma.done [#allocation3], 32
    $region81: #{tpu_custom_call.1} parent=1 // pred_fallthru
      _
    // Predicated region
    $region82: #{tpu_custom_call.1} parent=1 // pred_check
      _
    $region83: #{tpu_custom_call.1} parent=1 // pred_check_branch
      %1070 = sbr.rel (0) target = $region85
    $region84: #{tpu_custom_call.1} parent=1 // pred_region
      %1071 = dma.done [#allocation5], 32
    $region85: #{tpu_custom_call.1} parent=1 // pred_fallthru
      _
    %1072 = vsyncpa [#allocation3], 1
    %1073 = vsyncpa [#allocation5], 1

</llo_original>
